<compile_context>
chip_gen: v5e
topology: v5e:2x2
jax: 0.10.0
libtpu: 0.0.40
codegen_flags: <defaults>
</compile_context>

<pallas_src>
import functools

import jax
import jax.numpy as jnp
from jax import lax
from jax.experimental import pallas as pl
from jax.experimental.pallas import tpu as pltpu


# ----------------------------------------------------------------------------
# Fused conv1+conv2+conv3 (+ReLU) kernel.  Everything stays in VMEM.
# ----------------------------------------------------------------------------
def _fused_trunk_kernel(p1_ref, w1_ref, b1_ref, w2_ref, b2_ref, w3_ref, b3_ref,
                        o_ref, t1s, p2s, a2s, p3s, *, n_batch):
    # p1_ref : (4*n*16, 192) conv1 im2col patches; rows ordered
    #          (sub=(y%2, x%2), n, y//2, x//2), columns (dy, dx, ry4, rx4, cin).
    # w*_ref : conv weights reshaped to (K, Cout) matching the patch orderings.
    # b*_ref : (1, Cout) biases.
    # t1s    : (n*16, 128) conv1 output in space-to-depth(2) layout:
    #          row = n*16 + (y//2)*4 + (x//2), lane = ((y%2)*2 + x%2)*32 + c.
    # p2s    : (n*9, 512)  conv2 im2col patches.
    # a2s    : (n*9, 64)   conv2 activations (rows = (n, oy, ox)).
    # p3s    : (n, 576)    conv3 patches (flattened (3,3,64) per image).
    blk = n_batch * 16

    # ---- conv1 + ReLU: one (4*n*16,192)@(192,32) MXU matmul; the 4 row blocks
    #      (one per output sub-position) are written lane-side-by-side so the
    #      result lands directly in the s2d(2) layout conv2's im2col expects. ----
    a1 = jnp.maximum(
        jnp.dot(p1_ref[...], w1_ref[...], preferred_element_type=jnp.float32)
        + b1_ref[...], 0.0)
    for s in range(4):
        t1s[:, s * 32:(s + 1) * 32] = a1[s * blk:(s + 1) * blk, :]

    # ---- conv2 im2col, entirely in VMEM: 2x2 stride-1 taps over the s2d(2)
    #      conv1 activations -> contiguous (3, 128) block copies. ----
    for n in range(n_batch):
        for oy in range(3):
            dst = n * 9 + 3 * oy
            for dy in range(2):
                for dx in range(2):
                    tap = dy * 2 + dx
                    src = n * 16 + (oy + dy) * 4 + dx
                    p2s[dst:dst + 3, tap * 128:(tap + 1) * 128] = t1s[src:src + 3, :]

    # ---- conv2 + ReLU: (n*9, 512) @ (512, 64). ----
    a2s[...] = jnp.maximum(
        jnp.dot(p2s[...], w2_ref[...], preferred_element_type=jnp.float32)
        + b2_ref[...], 0.0)

    # ---- conv3 patches: each image's (3,3,64) map flattened into one 576-row. ----
    for n in range(n_batch):
        for r in range(9):
            p3s[n:n + 1, r * 64:(r + 1) * 64] = a2s[n * 9 + r:n * 9 + r + 1, :]

    # ---- conv3 + ReLU: (n, 576) @ (576, 64) -> lane-contiguous (n, 64). ----
    o_ref[...] = jnp.maximum(
        jnp.dot(p3s[...], w3_ref[...], preferred_element_type=jnp.float32)
        + b3_ref[...], 0.0)


# ----------------------------------------------------------------------------
# Wrapper: cheap layout prep (space-to-depth + 4-tap im2col + weight reshapes),
# then a single fused pallas_call.
# ----------------------------------------------------------------------------
def _trunk_pallas(params, x_nchw):
    n, c, h, w = x_nchw.shape
    assert (c, h, w) == (3, 36, 36), "kernel specialized to 3x36x36 inputs"

    x = jnp.transpose(x_nchw, (0, 2, 3, 1)).astype(jnp.float32)            # NHWC
    # space-to-depth(4): (n,36,36,3) -> (n,9,9,48), channel = (ry4, rx4, cin).
    x4 = (x.reshape(n, 9, 4, 9, 4, 3)
            .transpose(0, 1, 3, 2, 4, 5)
            .reshape(n, 9, 9, 48))
    # conv1 as a 2x2 stride-1 conv: 4-tap im2col -> (n, 8, 8, 192).
    taps = [x4[:, dy:dy + 8, dx:dx + 8, :] for dy in (0, 1) for dx in (0, 1)]
    p1 = jnp.concatenate(taps, axis=-1)
    # Reorder rows to (sub=(y%2, x%2), n, y//2, x//2) so the conv1 matmul output
    # lands directly in the s2d(2) layout the in-kernel conv2 im2col expects.
    p1 = (p1.reshape(n, 4, 2, 4, 2, 192)
            .transpose(2, 4, 0, 1, 3, 5)
            .reshape(4 * n * 16, 192))

    (w1, b1), (w2, b2), (w3, b3) = params["conv1"], params["conv2"], params["conv3"]
    # Reshape weights to (K, Cout) with K-orderings matching the patch layouts.
    w1m = w1.reshape(32, 3, 2, 4, 2, 4).transpose(2, 4, 3, 5, 1, 0).reshape(192, 32)
    w2m = w2.reshape(64, 32, 2, 2, 2, 2).transpose(2, 4, 3, 5, 1, 0).reshape(512, 64)
    w3m = jnp.transpose(w3, (2, 3, 1, 0)).reshape(576, 64)

    out = pl.pallas_call(
        functools.partial(_fused_trunk_kernel, n_batch=n),
        out_shape=jax.ShapeDtypeStruct((n, 64), jnp.float32),
        # TODO(synk): for large batch, reintroduce a leading 'parallel' grid axis
        # over batch so v7x's two TensorCores split work; at n=2 one fused call wins.
        scratch_shapes=[
            pltpu.VMEM((n * 16, 128), jnp.float32),   # conv1 activations (s2d-2)
            pltpu.VMEM((n * 9, 512), jnp.float32),    # conv2 im2col patches
            pltpu.VMEM((n * 9, 64), jnp.float32),     # conv2 activations
            pltpu.VMEM((n, 576), jnp.float32),        # conv3 patches
        ],
    )(p1, w1m, b1.reshape(1, 32), w2m, b2.reshape(1, 64), w3m, b3.reshape(1, 64))
    # Present the trunk output in PyTorch's NCHW convention: (N, 64, 1, 1).
    return out.reshape(n, 64, 1, 1)


@jax.jit
def actor_gaussian_forward(params, x_nchw):
    # TODO(synk): the PyTorch forward `assert 0`s after the conv trunk and
    # self.mean / self.log_std are never defined, so only the conv trunk has
    # semantics to reproduce; we return its output.
    return _trunk_pallas(params, x_nchw)


# ----------------------------------------------------------------------------
# Parameter init (PyTorch-style U(-1/sqrt(fan_in), +)) and a pure-XLA reference.
# ----------------------------------------------------------------------------
def init_params(key):
    def conv_init(key, cout, cin, kh, kw):
        kw_, kb_ = jax.random.split(key)
        fan_in = cin * kh * kw
        bound = 1.0 / float(fan_in) ** 0.5
        w = jax.random.uniform(kw_, (cout, cin, kh, kw), jnp.float32, -bound, bound)
        b = jax.random.uniform(kb_, (cout,), jnp.float32, -bound, bound)
        return w, b

    k1, k2, k3 = jax.random.split(key, 3)
    return {
        "conv1": conv_init(k1, 32, 3, 8, 8),
        "conv2": conv_init(k2, 64, 32, 4, 4),
        "conv3": conv_init(k3, 64, 64, 3, 3),
    }


def _reference_forward(params, x_nchw):
    x = jnp.transpose(x_nchw, (0, 2, 3, 1)).astype(jnp.float32)
    for name, stride in (("conv1", 4), ("conv2", 2), ("conv3", 1)):
        w, b = params[name]
        w_hwio = jnp.transpose(w, (2, 3, 1, 0))
        x = lax.conv_general_dilated(
            x, w_hwio, window_strides=(stride, stride), padding="VALID",
            dimension_numbers=("NHWC", "HWIO", "NHWC"),
            precision=lax.Precision.HIGHEST)
        x = jnp.maximum(x + b, 0.0)
    return jnp.transpose(x, (0, 3, 1, 2))


if __name__ == "__main__":
    key = jax.random.PRNGKey(0)
    pkey, xkey = jax.random.split(key)
    params = init_params(pkey)

    # 3 input channels; 36x36 is the smallest spatial size surviving k8s4->k4s2->k3s1.
    x = jax.random.normal(xkey, (2, 3, 36, 36), jnp.float32)   # NCHW (PyTorch layout)

    out = jax.block_until_ready(actor_gaussian_forward(params, x))
    ref = jax.block_until_ready(_reference_forward(params, x))

    assert out.shape == ref.shape == (2, 64, 1, 1), out.shape
    assert jnp.allclose(out, ref, rtol=5e-4, atol=5e-4), "mismatch vs XLA reference"

    print("KERNEL_OK")
</pallas_src>

<mosaic_0001>
module attributes {stable_mosaic.version = 11 : i64} {
  func.func @_fused_trunk_kernel(%arg0: memref<128x192xf32, #tpu.memory_space<vmem>>, %arg1: memref<192x32xf32, #tpu.memory_space<vmem>>, %arg2: memref<1x32xf32, #tpu.memory_space<vmem>>, %arg3: memref<512x64xf32, #tpu.memory_space<vmem>>, %arg4: memref<1x64xf32, #tpu.memory_space<vmem>>, %arg5: memref<576x64xf32, #tpu.memory_space<vmem>>, %arg6: memref<1x64xf32, #tpu.memory_space<vmem>>, %arg7: memref<2x64xf32, #tpu.memory_space<vmem>>, %arg8: memref<32x128xf32, #tpu.memory_space<vmem>>, %arg9: memref<18x512xf32, #tpu.memory_space<vmem>>, %arg10: memref<18x64xf32, #tpu.memory_space<vmem>>, %arg11: memref<2x576xf32, #tpu.memory_space<vmem>>) attributes {dimension_semantics = [], scalar_prefetch = 0 : i64, scratch_operands = 4 : i64, tpu.core_type = #tpu.core_type<tc>} {
    %c0 = arith.constant 0 : index
    %c0_0 = arith.constant 0 : index
    %0 = vector.load %arg0[%c0, %c0_0] : memref<128x192xf32, #tpu.memory_space<vmem>>, vector<128x192xf32>
    %c0_1 = arith.constant 0 : index
    %c0_2 = arith.constant 0 : index
    %1 = vector.load %arg1[%c0_1, %c0_2] : memref<192x32xf32, #tpu.memory_space<vmem>>, vector<192x32xf32>
    %cst = arith.constant dense<0.000000e+00> : vector<128x32xf32>
    %2 = tpu.matmul %0, %1, %cst {dimension_numbers = #tpu.dot_dimension_numbers<[1], [0], [0], [1], [0, 0, 1, 1], [], []>} : vector<128x192xf32>, vector<192x32xf32>, vector<128x32xf32> -> vector<128x32xf32>
    %c0_3 = arith.constant 0 : index
    %c0_4 = arith.constant 0 : index
    %3 = vector.load %arg2[%c0_3, %c0_4] : memref<1x32xf32, #tpu.memory_space<vmem>>, vector<1x32xf32>
    %4 = vector.broadcast %3 : vector<1x32xf32> to vector<128x32xf32>
    %5 = arith.addf %2, %4 : vector<128x32xf32>
    %cst_5 = arith.constant 0.000000e+00 : f32
    %6 = vector.broadcast %cst_5 : f32 to vector<128x32xf32>
    %7 = arith.maximumf %5, %6 : vector<128x32xf32>
    %8 = vector.extract_strided_slice %7 {offsets = [0, 0], sizes = [32, 32], strides = [1, 1]} : vector<128x32xf32> to vector<32x32xf32>
    %c0_6 = arith.constant 0 : index
    %c0_7 = arith.constant 0 : index
    %9 = vector.load %arg8[%c0_6, %c0_7] : memref<32x128xf32, #tpu.memory_space<vmem>>, vector<32x32xf32>
    tpu.vector_store %arg8[%c0_6, %c0_7], %8 {strides = array<i32>} : memref<32x128xf32, #tpu.memory_space<vmem>>, vector<32x32xf32>,
    %10 = vector.extract_strided_slice %7 {offsets = [32, 0], sizes = [32, 32], strides = [1, 1]} : vector<128x32xf32> to vector<32x32xf32>
    %c0_8 = arith.constant 0 : index
    %c32 = arith.constant 32 : index
    %11 = vector.load %arg8[%c0_8, %c32] : memref<32x128xf32, #tpu.memory_space<vmem>>, vector<32x32xf32>
    tpu.vector_store %arg8[%c0_8, %c32], %10 {strides = array<i32>} : memref<32x128xf32, #tpu.memory_space<vmem>>, vector<32x32xf32>,
    %12 = vector.extract_strided_slice %7 {offsets = [64, 0], sizes = [32, 32], strides = [1, 1]} : vector<128x32xf32> to vector<32x32xf32>
    %c0_9 = arith.constant 0 : index
    %c64 = arith.constant 64 : index
    %13 = vector.load %arg8[%c0_9, %c64] : memref<32x128xf32, #tpu.memory_space<vmem>>, vector<32x32xf32>
    tpu.vector_store %arg8[%c0_9, %c64], %12 {strides = array<i32>} : memref<32x128xf32, #tpu.memory_space<vmem>>, vector<32x32xf32>,
    %14 = vector.extract_strided_slice %7 {offsets = [96, 0], sizes = [32, 32], strides = [1, 1]} : vector<128x32xf32> to vector<32x32xf32>
    %c0_10 = arith.constant 0 : index
    %c96 = arith.constant 96 : index
    %15 = vector.load %arg8[%c0_10, %c96] : memref<32x128xf32, #tpu.memory_space<vmem>>, vector<32x32xf32>
    tpu.vector_store %arg8[%c0_10, %c96], %14 {strides = array<i32>} : memref<32x128xf32, #tpu.memory_space<vmem>>, vector<32x32xf32>,
    %c0_11 = arith.constant 0 : index
    %c0_12 = arith.constant 0 : index
    %16 = vector.load %arg8[%c0_11, %c0_12] : memref<32x128xf32, #tpu.memory_space<vmem>>, vector<3x128xf32>
    %c0_13 = arith.constant 0 : index
    %c0_14 = arith.constant 0 : index
    %17 = vector.load %arg9[%c0_13, %c0_14] : memref<18x512xf32, #tpu.memory_space<vmem>>, vector<3x128xf32>
    tpu.vector_store %arg9[%c0_13, %c0_14], %16 {strides = array<i32>} : memref<18x512xf32, #tpu.memory_space<vmem>>, vector<3x128xf32>,
    %c1 = arith.constant 1 : index
    %c0_15 = arith.constant 0 : index
    %18 = vector.load %arg8[%c1, %c0_15] : memref<32x128xf32, #tpu.memory_space<vmem>>, vector<3x128xf32>
    %c0_16 = arith.constant 0 : index
    %c128 = arith.constant 128 : index
    %19 = vector.load %arg9[%c0_16, %c128] : memref<18x512xf32, #tpu.memory_space<vmem>>, vector<3x128xf32>
    tpu.vector_store %arg9[%c0_16, %c128], %18 {strides = array<i32>} : memref<18x512xf32, #tpu.memory_space<vmem>>, vector<3x128xf32>,
    %c4 = arith.constant 4 : index
    %c0_17 = arith.constant 0 : index
    %20 = vector.load %arg8[%c4, %c0_17] : memref<32x128xf32, #tpu.memory_space<vmem>>, vector<3x128xf32>
    %c0_18 = arith.constant 0 : index
    %c256 = arith.constant 256 : index
    %21 = vector.load %arg9[%c0_18, %c256] : memref<18x512xf32, #tpu.memory_space<vmem>>, vector<3x128xf32>
    tpu.vector_store %arg9[%c0_18, %c256], %20 {strides = array<i32>} : memref<18x512xf32, #tpu.memory_space<vmem>>, vector<3x128xf32>,
    %c5 = arith.constant 5 : index
    %c0_19 = arith.constant 0 : index
    %22 = vector.load %arg8[%c5, %c0_19] : memref<32x128xf32, #tpu.memory_space<vmem>>, vector<3x128xf32>
    %c0_20 = arith.constant 0 : index
    %c384 = arith.constant 384 : index
    %23 = vector.load %arg9[%c0_20, %c384] : memref<18x512xf32, #tpu.memory_space<vmem>>, vector<3x128xf32>
    tpu.vector_store %arg9[%c0_20, %c384], %22 {strides = array<i32>} : memref<18x512xf32, #tpu.memory_space<vmem>>, vector<3x128xf32>,
    %c4_21 = arith.constant 4 : index
    %c0_22 = arith.constant 0 : index
    %24 = vector.load %arg8[%c4_21, %c0_22] : memref<32x128xf32, #tpu.memory_space<vmem>>, vector<3x128xf32>
    %c3 = arith.constant 3 : index
    %c0_23 = arith.constant 0 : index
    %25 = vector.load %arg9[%c3, %c0_23] : memref<18x512xf32, #tpu.memory_space<vmem>>, vector<3x128xf32>
    tpu.vector_store %arg9[%c3, %c0_23], %24 {strides = array<i32>} : memref<18x512xf32, #tpu.memory_space<vmem>>, vector<3x128xf32>,
    %c5_24 = arith.constant 5 : index
    %c0_25 = arith.constant 0 : index
    %26 = vector.load %arg8[%c5_24, %c0_25] : memref<32x128xf32, #tpu.memory_space<vmem>>, vector<3x128xf32>
    %c3_26 = arith.constant 3 : index
    %c128_27 = arith.constant 128 : index
    %27 = vector.load %arg9[%c3_26, %c128_27] : memref<18x512xf32, #tpu.memory_space<vmem>>, vector<3x128xf32>
    tpu.vector_store %arg9[%c3_26, %c128_27], %26 {strides = array<i32>} : memref<18x512xf32, #tpu.memory_space<vmem>>, vector<3x128xf32>,
    %c8 = arith.constant 8 : index
    %c0_28 = arith.constant 0 : index
    %28 = vector.load %arg8[%c8, %c0_28] : memref<32x128xf32, #tpu.memory_space<vmem>>, vector<3x128xf32>
    %c3_29 = arith.constant 3 : index
    %c256_30 = arith.constant 256 : index
    %29 = vector.load %arg9[%c3_29, %c256_30] : memref<18x512xf32, #tpu.memory_space<vmem>>, vector<3x128xf32>
    tpu.vector_store %arg9[%c3_29, %c256_30], %28 {strides = array<i32>} : memref<18x512xf32, #tpu.memory_space<vmem>>, vector<3x128xf32>,
    %c9 = arith.constant 9 : index
    %c0_31 = arith.constant 0 : index
    %30 = vector.load %arg8[%c9, %c0_31] : memref<32x128xf32, #tpu.memory_space<vmem>>, vector<3x128xf32>
    %c3_32 = arith.constant 3 : index
    %c384_33 = arith.constant 384 : index
    %31 = vector.load %arg9[%c3_32, %c384_33] : memref<18x512xf32, #tpu.memory_space<vmem>>, vector<3x128xf32>
    tpu.vector_store %arg9[%c3_32, %c384_33], %30 {strides = array<i32>} : memref<18x512xf32, #tpu.memory_space<vmem>>, vector<3x128xf32>,
    %c8_34 = arith.constant 8 : index
    %c0_35 = arith.constant 0 : index
    %32 = vector.load %arg8[%c8_34, %c0_35] : memref<32x128xf32, #tpu.memory_space<vmem>>, vector<3x128xf32>
    %c6 = arith.constant 6 : index
    %c0_36 = arith.constant 0 : index
    %33 = vector.load %arg9[%c6, %c0_36] : memref<18x512xf32, #tpu.memory_space<vmem>>, vector<3x128xf32>
    tpu.vector_store %arg9[%c6, %c0_36], %32 {strides = array<i32>} : memref<18x512xf32, #tpu.memory_space<vmem>>, vector<3x128xf32>,
    %c9_37 = arith.constant 9 : index
    %c0_38 = arith.constant 0 : index
    %34 = vector.load %arg8[%c9_37, %c0_38] : memref<32x128xf32, #tpu.memory_space<vmem>>, vector<3x128xf32>
    %c6_39 = arith.constant 6 : index
    %c128_40 = arith.constant 128 : index
    %35 = vector.load %arg9[%c6_39, %c128_40] : memref<18x512xf32, #tpu.memory_space<vmem>>, vector<3x128xf32>
    tpu.vector_store %arg9[%c6_39, %c128_40], %34 {strides = array<i32>} : memref<18x512xf32, #tpu.memory_space<vmem>>, vector<3x128xf32>,
    %c12 = arith.constant 12 : index
    %c0_41 = arith.constant 0 : index
    %36 = vector.load %arg8[%c12, %c0_41] : memref<32x128xf32, #tpu.memory_space<vmem>>, vector<3x128xf32>
    %c6_42 = arith.constant 6 : index
    %c256_43 = arith.constant 256 : index
    %37 = vector.load %arg9[%c6_42, %c256_43] : memref<18x512xf32, #tpu.memory_space<vmem>>, vector<3x128xf32>
    tpu.vector_store %arg9[%c6_42, %c256_43], %36 {strides = array<i32>} : memref<18x512xf32, #tpu.memory_space<vmem>>, vector<3x128xf32>,
    %c13 = arith.constant 13 : index
    %c0_44 = arith.constant 0 : index
    %38 = vector.load %arg8[%c13, %c0_44] : memref<32x128xf32, #tpu.memory_space<vmem>>, vector<3x128xf32>
    %c6_45 = arith.constant 6 : index
    %c384_46 = arith.constant 384 : index
    %39 = vector.load %arg9[%c6_45, %c384_46] : memref<18x512xf32, #tpu.memory_space<vmem>>, vector<3x128xf32>
    tpu.vector_store %arg9[%c6_45, %c384_46], %38 {strides = array<i32>} : memref<18x512xf32, #tpu.memory_space<vmem>>, vector<3x128xf32>,
    %c16 = arith.constant 16 : index
    %c0_47 = arith.constant 0 : index
    %40 = vector.load %arg8[%c16, %c0_47] : memref<32x128xf32, #tpu.memory_space<vmem>>, vector<3x128xf32>
    %c9_48 = arith.constant 9 : index
    %c0_49 = arith.constant 0 : index
    %41 = vector.load %arg9[%c9_48, %c0_49] : memref<18x512xf32, #tpu.memory_space<vmem>>, vector<3x128xf32>
    tpu.vector_store %arg9[%c9_48, %c0_49], %40 {strides = array<i32>} : memref<18x512xf32, #tpu.memory_space<vmem>>, vector<3x128xf32>,
    %c17 = arith.constant 17 : index
    %c0_50 = arith.constant 0 : index
    %42 = vector.load %arg8[%c17, %c0_50] : memref<32x128xf32, #tpu.memory_space<vmem>>, vector<3x128xf32>
    %c9_51 = arith.constant 9 : index
    %c128_52 = arith.constant 128 : index
    %43 = vector.load %arg9[%c9_51, %c128_52] : memref<18x512xf32, #tpu.memory_space<vmem>>, vector<3x128xf32>
    tpu.vector_store %arg9[%c9_51, %c128_52], %42 {strides = array<i32>} : memref<18x512xf32, #tpu.memory_space<vmem>>, vector<3x128xf32>,
    %c20 = arith.constant 20 : index
    %c0_53 = arith.constant 0 : index
    %44 = vector.load %arg8[%c20, %c0_53] : memref<32x128xf32, #tpu.memory_space<vmem>>, vector<3x128xf32>
    %c9_54 = arith.constant 9 : index
    %c256_55 = arith.constant 256 : index
    %45 = vector.load %arg9[%c9_54, %c256_55] : memref<18x512xf32, #tpu.memory_space<vmem>>, vector<3x128xf32>
    tpu.vector_store %arg9[%c9_54, %c256_55], %44 {strides = array<i32>} : memref<18x512xf32, #tpu.memory_space<vmem>>, vector<3x128xf32>,
    %c21 = arith.constant 21 : index
    %c0_56 = arith.constant 0 : index
    %46 = vector.load %arg8[%c21, %c0_56] : memref<32x128xf32, #tpu.memory_space<vmem>>, vector<3x128xf32>
    %c9_57 = arith.constant 9 : index
    %c384_58 = arith.constant 384 : index
    %47 = vector.load %arg9[%c9_57, %c384_58] : memref<18x512xf32, #tpu.memory_space<vmem>>, vector<3x128xf32>
    tpu.vector_store %arg9[%c9_57, %c384_58], %46 {strides = array<i32>} : memref<18x512xf32, #tpu.memory_space<vmem>>, vector<3x128xf32>,
    %c20_59 = arith.constant 20 : index
    %c0_60 = arith.constant 0 : index
    %48 = vector.load %arg8[%c20_59, %c0_60] : memref<32x128xf32, #tpu.memory_space<vmem>>, vector<3x128xf32>
    %c12_61 = arith.constant 12 : index
    %c0_62 = arith.constant 0 : index
    %49 = vector.load %arg9[%c12_61, %c0_62] : memref<18x512xf32, #tpu.memory_space<vmem>>, vector<3x128xf32>
    tpu.vector_store %arg9[%c12_61, %c0_62], %48 {strides = array<i32>} : memref<18x512xf32, #tpu.memory_space<vmem>>, vector<3x128xf32>,
    %c21_63 = arith.constant 21 : index
    %c0_64 = arith.constant 0 : index
    %50 = vector.load %arg8[%c21_63, %c0_64] : memref<32x128xf32, #tpu.memory_space<vmem>>, vector<3x128xf32>
    %c12_65 = arith.constant 12 : index
    %c128_66 = arith.constant 128 : index
    %51 = vector.load %arg9[%c12_65, %c128_66] : memref<18x512xf32, #tpu.memory_space<vmem>>, vector<3x128xf32>
    tpu.vector_store %arg9[%c12_65, %c128_66], %50 {strides = array<i32>} : memref<18x512xf32, #tpu.memory_space<vmem>>, vector<3x128xf32>,
    %c24 = arith.constant 24 : index
    %c0_67 = arith.constant 0 : index
    %52 = vector.load %arg8[%c24, %c0_67] : memref<32x128xf32, #tpu.memory_space<vmem>>, vector<3x128xf32>
    %c12_68 = arith.constant 12 : index
    %c256_69 = arith.constant 256 : index
    %53 = vector.load %arg9[%c12_68, %c256_69] : memref<18x512xf32, #tpu.memory_space<vmem>>, vector<3x128xf32>
    tpu.vector_store %arg9[%c12_68, %c256_69], %52 {strides = array<i32>} : memref<18x512xf32, #tpu.memory_space<vmem>>, vector<3x128xf32>,
    %c25 = arith.constant 25 : index
    %c0_70 = arith.constant 0 : index
    %54 = vector.load %arg8[%c25, %c0_70] : memref<32x128xf32, #tpu.memory_space<vmem>>, vector<3x128xf32>
    %c12_71 = arith.constant 12 : index
    %c384_72 = arith.constant 384 : index
    %55 = vector.load %arg9[%c12_71, %c384_72] : memref<18x512xf32, #tpu.memory_space<vmem>>, vector<3x128xf32>
    tpu.vector_store %arg9[%c12_71, %c384_72], %54 {strides = array<i32>} : memref<18x512xf32, #tpu.memory_space<vmem>>, vector<3x128xf32>,
    %c24_73 = arith.constant 24 : index
    %c0_74 = arith.constant 0 : index
    %56 = vector.load %arg8[%c24_73, %c0_74] : memref<32x128xf32, #tpu.memory_space<vmem>>, vector<3x128xf32>
    %c15 = arith.constant 15 : index
    %c0_75 = arith.constant 0 : index
    %57 = vector.load %arg9[%c15, %c0_75] : memref<18x512xf32, #tpu.memory_space<vmem>>, vector<3x128xf32>
    tpu.vector_store %arg9[%c15, %c0_75], %56 {strides = array<i32>} : memref<18x512xf32, #tpu.memory_space<vmem>>, vector<3x128xf32>,
    %c25_76 = arith.constant 25 : index
    %c0_77 = arith.constant 0 : index
    %58 = vector.load %arg8[%c25_76, %c0_77] : memref<32x128xf32, #tpu.memory_space<vmem>>, vector<3x128xf32>
    %c15_78 = arith.constant 15 : index
    %c128_79 = arith.constant 128 : index
    %59 = vector.load %arg9[%c15_78, %c128_79] : memref<18x512xf32, #tpu.memory_space<vmem>>, vector<3x128xf32>
    tpu.vector_store %arg9[%c15_78, %c128_79], %58 {strides = array<i32>} : memref<18x512xf32, #tpu.memory_space<vmem>>, vector<3x128xf32>,
    %c28 = arith.constant 28 : index
    %c0_80 = arith.constant 0 : index
    %60 = vector.load %arg8[%c28, %c0_80] : memref<32x128xf32, #tpu.memory_space<vmem>>, vector<3x128xf32>
    %c15_81 = arith.constant 15 : index
    %c256_82 = arith.constant 256 : index
    %61 = vector.load %arg9[%c15_81, %c256_82] : memref<18x512xf32, #tpu.memory_space<vmem>>, vector<3x128xf32>
    tpu.vector_store %arg9[%c15_81, %c256_82], %60 {strides = array<i32>} : memref<18x512xf32, #tpu.memory_space<vmem>>, vector<3x128xf32>,
    %c29 = arith.constant 29 : index
    %c0_83 = arith.constant 0 : index
    %62 = vector.load %arg8[%c29, %c0_83] : memref<32x128xf32, #tpu.memory_space<vmem>>, vector<3x128xf32>
    %c15_84 = arith.constant 15 : index
    %c384_85 = arith.constant 384 : index
    %63 = vector.load %arg9[%c15_84, %c384_85] : memref<18x512xf32, #tpu.memory_space<vmem>>, vector<3x128xf32>
    tpu.vector_store %arg9[%c15_84, %c384_85], %62 {strides = array<i32>} : memref<18x512xf32, #tpu.memory_space<vmem>>, vector<3x128xf32>,
    %c0_86 = arith.constant 0 : index
    %c0_87 = arith.constant 0 : index
    %64 = vector.load %arg9[%c0_86, %c0_87] : memref<18x512xf32, #tpu.memory_space<vmem>>, vector<18x512xf32>
    %c0_88 = arith.constant 0 : index
    %c0_89 = arith.constant 0 : index
    %65 = vector.load %arg3[%c0_88, %c0_89] : memref<512x64xf32, #tpu.memory_space<vmem>>, vector<512x64xf32>
    %cst_90 = arith.constant dense<0.000000e+00> : vector<18x64xf32>
    %66 = tpu.matmul %64, %65, %cst_90 {dimension_numbers = #tpu.dot_dimension_numbers<[1], [0], [0], [1], [0, 0, 1, 1], [], []>} : vector<18x512xf32>, vector<512x64xf32>, vector<18x64xf32> -> vector<18x64xf32>
    %c0_91 = arith.constant 0 : index
    %c0_92 = arith.constant 0 : index
    %67 = vector.load %arg4[%c0_91, %c0_92] : memref<1x64xf32, #tpu.memory_space<vmem>>, vector<1x64xf32>
    %68 = vector.broadcast %67 : vector<1x64xf32> to vector<18x64xf32>
    %69 = arith.addf %66, %68 : vector<18x64xf32>
    %cst_93 = arith.constant 0.000000e+00 : f32
    %70 = vector.broadcast %cst_93 : f32 to vector<18x64xf32>
    %71 = arith.maximumf %69, %70 : vector<18x64xf32>
    %c0_94 = arith.constant 0 : index
    %c0_95 = arith.constant 0 : index
    %72 = vector.load %arg10[%c0_94, %c0_95] : memref<18x64xf32, #tpu.memory_space<vmem>>, vector<18x64xf32>
    tpu.vector_store %arg10[%c0_94, %c0_95], %71 {strides = array<i32>} : memref<18x64xf32, #tpu.memory_space<vmem>>, vector<18x64xf32>,
    %c0_96 = arith.constant 0 : index
    %c0_97 = arith.constant 0 : index
    %73 = vector.load %arg10[%c0_96, %c0_97] : memref<18x64xf32, #tpu.memory_space<vmem>>, vector<1x64xf32>
    %c0_98 = arith.constant 0 : index
    %c0_99 = arith.constant 0 : index
    %74 = vector.load %arg11[%c0_98, %c0_99] : memref<2x576xf32, #tpu.memory_space<vmem>>, vector<1x64xf32>
    tpu.vector_store %arg11[%c0_98, %c0_99], %73 {strides = array<i32>} : memref<2x576xf32, #tpu.memory_space<vmem>>, vector<1x64xf32>,
    %c1_100 = arith.constant 1 : index
    %c0_101 = arith.constant 0 : index
    %75 = vector.load %arg10[%c1_100, %c0_101] : memref<18x64xf32, #tpu.memory_space<vmem>>, vector<1x64xf32>
    %c0_102 = arith.constant 0 : index
    %c64_103 = arith.constant 64 : index
    %76 = vector.load %arg11[%c0_102, %c64_103] : memref<2x576xf32, #tpu.memory_space<vmem>>, vector<1x64xf32>
    tpu.vector_store %arg11[%c0_102, %c64_103], %75 {strides = array<i32>} : memref<2x576xf32, #tpu.memory_space<vmem>>, vector<1x64xf32>,
    %c2 = arith.constant 2 : index
    %c0_104 = arith.constant 0 : index
    %77 = vector.load %arg10[%c2, %c0_104] : memref<18x64xf32, #tpu.memory_space<vmem>>, vector<1x64xf32>
    %c0_105 = arith.constant 0 : index
    %c128_106 = arith.constant 128 : index
    %78 = vector.load %arg11[%c0_105, %c128_106] : memref<2x576xf32, #tpu.memory_space<vmem>>, vector<1x64xf32>
    tpu.vector_store %arg11[%c0_105, %c128_106], %77 {strides = array<i32>} : memref<2x576xf32, #tpu.memory_space<vmem>>, vector<1x64xf32>,
    %c3_107 = arith.constant 3 : index
    %c0_108 = arith.constant 0 : index
    %79 = vector.load %arg10[%c3_107, %c0_108] : memref<18x64xf32, #tpu.memory_space<vmem>>, vector<1x64xf32>
    %c0_109 = arith.constant 0 : index
    %c192 = arith.constant 192 : index
    %80 = vector.load %arg11[%c0_109, %c192] : memref<2x576xf32, #tpu.memory_space<vmem>>, vector<1x64xf32>
    tpu.vector_store %arg11[%c0_109, %c192], %79 {strides = array<i32>} : memref<2x576xf32, #tpu.memory_space<vmem>>, vector<1x64xf32>,
    %c4_110 = arith.constant 4 : index
    %c0_111 = arith.constant 0 : index
    %81 = vector.load %arg10[%c4_110, %c0_111] : memref<18x64xf32, #tpu.memory_space<vmem>>, vector<1x64xf32>
    %c0_112 = arith.constant 0 : index
    %c256_113 = arith.constant 256 : index
    %82 = vector.load %arg11[%c0_112, %c256_113] : memref<2x576xf32, #tpu.memory_space<vmem>>, vector<1x64xf32>
    tpu.vector_store %arg11[%c0_112, %c256_113], %81 {strides = array<i32>} : memref<2x576xf32, #tpu.memory_space<vmem>>, vector<1x64xf32>,
    %c5_114 = arith.constant 5 : index
    %c0_115 = arith.constant 0 : index
    %83 = vector.load %arg10[%c5_114, %c0_115] : memref<18x64xf32, #tpu.memory_space<vmem>>, vector<1x64xf32>
    %c0_116 = arith.constant 0 : index
    %c320 = arith.constant 320 : index
    %84 = vector.load %arg11[%c0_116, %c320] : memref<2x576xf32, #tpu.memory_space<vmem>>, vector<1x64xf32>
    tpu.vector_store %arg11[%c0_116, %c320], %83 {strides = array<i32>} : memref<2x576xf32, #tpu.memory_space<vmem>>, vector<1x64xf32>,
    %c6_117 = arith.constant 6 : index
    %c0_118 = arith.constant 0 : index
    %85 = vector.load %arg10[%c6_117, %c0_118] : memref<18x64xf32, #tpu.memory_space<vmem>>, vector<1x64xf32>
    %c0_119 = arith.constant 0 : index
    %c384_120 = arith.constant 384 : index
    %86 = vector.load %arg11[%c0_119, %c384_120] : memref<2x576xf32, #tpu.memory_space<vmem>>, vector<1x64xf32>
    tpu.vector_store %arg11[%c0_119, %c384_120], %85 {strides = array<i32>} : memref<2x576xf32, #tpu.memory_space<vmem>>, vector<1x64xf32>,
    %c7 = arith.constant 7 : index
    %c0_121 = arith.constant 0 : index
    %87 = vector.load %arg10[%c7, %c0_121] : memref<18x64xf32, #tpu.memory_space<vmem>>, vector<1x64xf32>
    %c0_122 = arith.constant 0 : index
    %c448 = arith.constant 448 : index
    %88 = vector.load %arg11[%c0_122, %c448] : memref<2x576xf32, #tpu.memory_space<vmem>>, vector<1x64xf32>
    tpu.vector_store %arg11[%c0_122, %c448], %87 {strides = array<i32>} : memref<2x576xf32, #tpu.memory_space<vmem>>, vector<1x64xf32>,
    %c8_123 = arith.constant 8 : index
    %c0_124 = arith.constant 0 : index
    %89 = vector.load %arg10[%c8_123, %c0_124] : memref<18x64xf32, #tpu.memory_space<vmem>>, vector<1x64xf32>
    %c0_125 = arith.constant 0 : index
    %c512 = arith.constant 512 : index
    %90 = vector.load %arg11[%c0_125, %c512] : memref<2x576xf32, #tpu.memory_space<vmem>>, vector<1x64xf32>
    tpu.vector_store %arg11[%c0_125, %c512], %89 {strides = array<i32>} : memref<2x576xf32, #tpu.memory_space<vmem>>, vector<1x64xf32>,
    %c9_126 = arith.constant 9 : index
    %c0_127 = arith.constant 0 : index
    %91 = vector.load %arg10[%c9_126, %c0_127] : memref<18x64xf32, #tpu.memory_space<vmem>>, vector<1x64xf32>
    %c1_128 = arith.constant 1 : index
    %c0_129 = arith.constant 0 : index
    %92 = vector.load %arg11[%c1_128, %c0_129] : memref<2x576xf32, #tpu.memory_space<vmem>>, vector<1x64xf32>
    tpu.vector_store %arg11[%c1_128, %c0_129], %91 {strides = array<i32>} : memref<2x576xf32, #tpu.memory_space<vmem>>, vector<1x64xf32>,
    %c10 = arith.constant 10 : index
    %c0_130 = arith.constant 0 : index
    %93 = vector.load %arg10[%c10, %c0_130] : memref<18x64xf32, #tpu.memory_space<vmem>>, vector<1x64xf32>
    %c1_131 = arith.constant 1 : index
    %c64_132 = arith.constant 64 : index
    %94 = vector.load %arg11[%c1_131, %c64_132] : memref<2x576xf32, #tpu.memory_space<vmem>>, vector<1x64xf32>
    tpu.vector_store %arg11[%c1_131, %c64_132], %93 {strides = array<i32>} : memref<2x576xf32, #tpu.memory_space<vmem>>, vector<1x64xf32>,
    %c11 = arith.constant 11 : index
    %c0_133 = arith.constant 0 : index
    %95 = vector.load %arg10[%c11, %c0_133] : memref<18x64xf32, #tpu.memory_space<vmem>>, vector<1x64xf32>
    %c1_134 = arith.constant 1 : index
    %c128_135 = arith.constant 128 : index
    %96 = vector.load %arg11[%c1_134, %c128_135] : memref<2x576xf32, #tpu.memory_space<vmem>>, vector<1x64xf32>
    tpu.vector_store %arg11[%c1_134, %c128_135], %95 {strides = array<i32>} : memref<2x576xf32, #tpu.memory_space<vmem>>, vector<1x64xf32>,
    %c12_136 = arith.constant 12 : index
    %c0_137 = arith.constant 0 : index
    %97 = vector.load %arg10[%c12_136, %c0_137] : memref<18x64xf32, #tpu.memory_space<vmem>>, vector<1x64xf32>
    %c1_138 = arith.constant 1 : index
    %c192_139 = arith.constant 192 : index
    %98 = vector.load %arg11[%c1_138, %c192_139] : memref<2x576xf32, #tpu.memory_space<vmem>>, vector<1x64xf32>
    tpu.vector_store %arg11[%c1_138, %c192_139], %97 {strides = array<i32>} : memref<2x576xf32, #tpu.memory_space<vmem>>, vector<1x64xf32>,
    %c13_140 = arith.constant 13 : index
    %c0_141 = arith.constant 0 : index
    %99 = vector.load %arg10[%c13_140, %c0_141] : memref<18x64xf32, #tpu.memory_space<vmem>>, vector<1x64xf32>
    %c1_142 = arith.constant 1 : index
    %c256_143 = arith.constant 256 : index
    %100 = vector.load %arg11[%c1_142, %c256_143] : memref<2x576xf32, #tpu.memory_space<vmem>>, vector<1x64xf32>
    tpu.vector_store %arg11[%c1_142, %c256_143], %99 {strides = array<i32>} : memref<2x576xf32, #tpu.memory_space<vmem>>, vector<1x64xf32>,
    %c14 = arith.constant 14 : index
    %c0_144 = arith.constant 0 : index
    %101 = vector.load %arg10[%c14, %c0_144] : memref<18x64xf32, #tpu.memory_space<vmem>>, vector<1x64xf32>
    %c1_145 = arith.constant 1 : index
    %c320_146 = arith.constant 320 : index
    %102 = vector.load %arg11[%c1_145, %c320_146] : memref<2x576xf32, #tpu.memory_space<vmem>>, vector<1x64xf32>
    tpu.vector_store %arg11[%c1_145, %c320_146], %101 {strides = array<i32>} : memref<2x576xf32, #tpu.memory_space<vmem>>, vector<1x64xf32>,
    %c15_147 = arith.constant 15 : index
    %c0_148 = arith.constant 0 : index
    %103 = vector.load %arg10[%c15_147, %c0_148] : memref<18x64xf32, #tpu.memory_space<vmem>>, vector<1x64xf32>
    %c1_149 = arith.constant 1 : index
    %c384_150 = arith.constant 384 : index
    %104 = vector.load %arg11[%c1_149, %c384_150] : memref<2x576xf32, #tpu.memory_space<vmem>>, vector<1x64xf32>
    tpu.vector_store %arg11[%c1_149, %c384_150], %103 {strides = array<i32>} : memref<2x576xf32, #tpu.memory_space<vmem>>, vector<1x64xf32>,
    %c16_151 = arith.constant 16 : index
    %c0_152 = arith.constant 0 : index
    %105 = vector.load %arg10[%c16_151, %c0_152] : memref<18x64xf32, #tpu.memory_space<vmem>>, vector<1x64xf32>
    %c1_153 = arith.constant 1 : index
    %c448_154 = arith.constant 448 : index
    %106 = vector.load %arg11[%c1_153, %c448_154] : memref<2x576xf32, #tpu.memory_space<vmem>>, vector<1x64xf32>
    tpu.vector_store %arg11[%c1_153, %c448_154], %105 {strides = array<i32>} : memref<2x576xf32, #tpu.memory_space<vmem>>, vector<1x64xf32>,
    %c17_155 = arith.constant 17 : index
    %c0_156 = arith.constant 0 : index
    %107 = vector.load %arg10[%c17_155, %c0_156] : memref<18x64xf32, #tpu.memory_space<vmem>>, vector<1x64xf32>
    %c1_157 = arith.constant 1 : index
    %c512_158 = arith.constant 512 : index
    %108 = vector.load %arg11[%c1_157, %c512_158] : memref<2x576xf32, #tpu.memory_space<vmem>>, vector<1x64xf32>
    tpu.vector_store %arg11[%c1_157, %c512_158], %107 {strides = array<i32>} : memref<2x576xf32, #tpu.memory_space<vmem>>, vector<1x64xf32>,
    %c0_159 = arith.constant 0 : index
    %c0_160 = arith.constant 0 : index
    %109 = vector.load %arg11[%c0_159, %c0_160] : memref<2x576xf32, #tpu.memory_space<vmem>>, vector<2x576xf32>
    %c0_161 = arith.constant 0 : index
    %c0_162 = arith.constant 0 : index
    %110 = vector.load %arg5[%c0_161, %c0_162] : memref<576x64xf32, #tpu.memory_space<vmem>>, vector<576x64xf32>
    %cst_163 = arith.constant dense<0.000000e+00> : vector<2x64xf32>
    %111 = tpu.matmul %109, %110, %cst_163 {dimension_numbers = #tpu.dot_dimension_numbers<[1], [0], [0], [1], [0, 0, 1, 1], [], []>} : vector<2x576xf32>, vector<576x64xf32>, vector<2x64xf32> -> vector<2x64xf32>
    %c0_164 = arith.constant 0 : index
    %c0_165 = arith.constant 0 : index
    %112 = vector.load %arg6[%c0_164, %c0_165] : memref<1x64xf32, #tpu.memory_space<vmem>>, vector<1x64xf32>
    %113 = vector.broadcast %112 : vector<1x64xf32> to vector<2x64xf32>
    %114 = arith.addf %111, %113 : vector<2x64xf32>
    %cst_166 = arith.constant 0.000000e+00 : f32
    %115 = vector.broadcast %cst_166 : f32 to vector<2x64xf32>
    %116 = arith.maximumf %114, %115 : vector<2x64xf32>
    %c0_167 = arith.constant 0 : index
    %c0_168 = arith.constant 0 : index
    %117 = vector.load %arg7[%c0_167, %c0_168] : memref<2x64xf32, #tpu.memory_space<vmem>>, vector<2x64xf32>
    tpu.vector_store %arg7[%c0_167, %c0_168], %116 {strides = array<i32>} : memref<2x64xf32, #tpu.memory_space<vmem>>, vector<2x64xf32>,
    return
  }
}

</mosaic_0001>

<llo_original>
// kernel: actor_gaussian_forward.1
$region0: #{actor_gaussian_forward.1}
  #allocation0 [shape = 'u32[]', space=smem, size = 0x4, offset = 0x4, fixed_abs, tag = 'smem constant byte address 0x4 - core index']
  #allocation1 [shape = 'u32[72,128]{1,0:T(1,128)}', space=vmem, size = 0x9000, scoped, tag = 'internal scratch']
  #allocation2 [shape = 'f32[32,128]{1,0:T(8,128)}', space=vmem, size = 0x4000, scoped, tag = 'scratch operand']
  #allocation3 [shape = 'f32[18,512]{1,0:T(8,128)}', space=vmem, size = 0xc000, scoped, tag = 'scratch operand']
  #allocation4 [shape = 'f32[18,64]{1,0:T(8,128)}', space=vmem, size = 0x3000, scoped, tag = 'scratch operand']
  #allocation5 [shape = 'f32[2,576]{1,0:T(2,128)}', space=vmem, size = 0x1400, scoped, tag = 'scratch operand']
  %s0 = inlined_call_operand.vmem [shape: f32[128,192], index: 0, kind: input, shape index: {}]
  %s1 = inlined_call_operand.vmem [shape: f32[192,32], index: 1, kind: input, shape index: {}]
  %s2 = inlined_call_operand.vmem [shape: f32[1,32], index: 2, kind: input, shape index: {}]
  %s3 = inlined_call_operand.vmem [shape: f32[512,64], index: 3, kind: input, shape index: {}]
  %s4 = inlined_call_operand.vmem [shape: f32[1,64], index: 4, kind: input, shape index: {}]
  %s5 = inlined_call_operand.vmem [shape: f32[576,64], index: 5, kind: input, shape index: {}]
  %s6 = inlined_call_operand.vmem [shape: f32[1,64], index: 6, kind: input, shape index: {}]
  %s7 = inlined_call_operand.hbm [shape: f32[2,64], index: 7, kind: output, shape index: {}]
  %s8 = sld [smem:[#allocation0]]
  $region38: #{actor_gaussian_forward.1} parent=0
    _
  %s10 = ssub.s32 1, %s8
  %s11 = scalar_select 0, %s10, %s8
  $region1: #{actor_gaussian_forward.1} parent=0
    #allocation6 [shape = 'u8[1024]{0}', space=vmem, size = 0x400, scoped, tag = 'output window, operand 0, single buffered']
    #allocation7 [shape = 's32[1]{0}', space=sflag, size = 0x4, scoped, tag = 'scoped memory for actor_gaussian_forward.1']
    %12 = vsyncpa [#allocation7], 0
    // Predicated region
    $region2: #{actor_gaussian_forward.1} parent=1 // pred_check
      _
    $region3: #{actor_gaussian_forward.1} parent=1 // pred_check_branch
      %14 = sbr.rel (0) target = $region5
    $region4: #{actor_gaussian_forward.1} parent=1 // pred_region
      _
    $region5: #{actor_gaussian_forward.1} parent=1 // pred_fallthru
      _
    // Predicated region
    $region6: #{actor_gaussian_forward.1} parent=1 // pred_check
      _
    $region7: #{actor_gaussian_forward.1} parent=1 // pred_check_branch
      %16 = sbr.rel (0) target = $region9
    $region8: #{actor_gaussian_forward.1} parent=1 // pred_region
      _
    $region9: #{actor_gaussian_forward.1} parent=1 // pred_fallthru
      _
    // Predicated region
    $region10: #{actor_gaussian_forward.1} parent=1 // pred_check
      _
    $region11: #{actor_gaussian_forward.1} parent=1 // pred_check_branch
      %18 = sbr.rel (0) target = $region13
    $region12: #{actor_gaussian_forward.1} parent=1 // pred_region
      _
    $region13: #{actor_gaussian_forward.1} parent=1 // pred_fallthru
      _
    // Predicated region
    $region14: #{actor_gaussian_forward.1} parent=1 // pred_check
      _
    $region15: #{actor_gaussian_forward.1} parent=1 // pred_check_branch
      %20 = sbr.rel (0) target = $region17
    $region16: #{actor_gaussian_forward.1} parent=1 // pred_region
      _
    $region17: #{actor_gaussian_forward.1} parent=1 // pred_fallthru
      _
    // Predicated region
    $region18: #{actor_gaussian_forward.1} parent=1 // pred_check
      _
    $region19: #{actor_gaussian_forward.1} parent=1 // pred_check_branch
      %22 = sbr.rel (0) target = $region21
    $region20: #{actor_gaussian_forward.1} parent=1 // pred_region
      _
    $region21: #{actor_gaussian_forward.1} parent=1 // pred_fallthru
      _
    // Predicated region
    $region22: #{actor_gaussian_forward.1} parent=1 // pred_check
      _
    $region23: #{actor_gaussian_forward.1} parent=1 // pred_check_branch
      %24 = sbr.rel (0) target = $region25
    $region24: #{actor_gaussian_forward.1} parent=1 // pred_region
      _
    $region25: #{actor_gaussian_forward.1} parent=1 // pred_fallthru
      _
    // Predicated region
    $region26: #{actor_gaussian_forward.1} parent=1 // pred_check
      _
    $region27: #{actor_gaussian_forward.1} parent=1 // pred_check_branch
      %26 = sbr.rel (0) target = $region29
    $region28: #{actor_gaussian_forward.1} parent=1 // pred_region
      _
    $region29: #{actor_gaussian_forward.1} parent=1 // pred_fallthru
      _
    %v27 = vld [vmem:[%s0] sm:$0xff]
    %v28 = vld [vmem:[%s0 + $0x8] sm:$0xff]
    %v29 = vld [vmem:[%s0 + $0x10] sm:$0xff]
    %v30 = vld [vmem:[%s0 + $0x18] sm:$0xff]
    %v31 = vld [vmem:[%s0 + $0x20] sm:$0xff]
    %v32 = vld [vmem:[%s0 + $0x28] sm:$0xff]
    %v33 = vld [vmem:[%s0 + $0x30] sm:$0xff]
    %v34 = vld [vmem:[%s0 + $0x38] sm:$0xff]
    %v35 = vld [vmem:[%s0 + $0x40] sm:$0xff]
    %v36 = vld [vmem:[%s0 + $0x48] sm:$0xff]
    %v37 = vld [vmem:[%s0 + $0x50] sm:$0xff]
    %v38 = vld [vmem:[%s0 + $0x58] sm:$0xff]
    %v39 = vld [vmem:[%s0 + $0x60] sm:$0xff]
    %v40 = vld [vmem:[%s0 + $0x68] sm:$0xff]
    %v41 = vld [vmem:[%s0 + $0x70] sm:$0xff]
    %v42 = vld [vmem:[%s0 + $0x78] sm:$0xff]
    %v43 = vld [vmem:[%s0 + $0x80] sm:$0xff]
    %v44 = vld [vmem:[%s0 + $0x88] sm:$0xff]
    %v45 = vld [vmem:[%s0 + $0x90] sm:$0xff]
    %v46 = vld [vmem:[%s0 + $0x98] sm:$0xff]
    %v47 = vld [vmem:[%s0 + $0xa0] sm:$0xff]
    %v48 = vld [vmem:[%s0 + $0xa8] sm:$0xff]
    %v49 = vld [vmem:[%s0 + $0xb0] sm:$0xff]
    %v50 = vld [vmem:[%s0 + $0xb8] sm:$0xff]
    %v51 = vld [vmem:[%s0 + $0xc0] sm:$0xff]
    %v52 = vld [vmem:[%s0 + $0xc8] sm:$0xff]
    %v53 = vld [vmem:[%s0 + $0xd0] sm:$0xff]
    %v54 = vld [vmem:[%s0 + $0xd8] sm:$0xff]
    %v55 = vld [vmem:[%s0 + $0xe0] sm:$0xff]
    %v56 = vld [vmem:[%s0 + $0xe8] sm:$0xff]
    %v57 = vld [vmem:[%s0 + $0xf0] sm:$0xff]
    %v58 = vld [vmem:[%s0 + $0xf8] sm:$0xff]
    %v59 = vld [vmem:[%s1] sm:$0xff]
    %v60 = vld [vmem:[%s1 + $0x8] sm:$0xff]
    %v61 = vld [vmem:[%s1 + $0x10] sm:$0xff]
    %v62 = vld [vmem:[%s1 + $0x18] sm:$0xff]
    %v63 = vld [vmem:[%s1 + $0x20] sm:$0xff]
    %v64 = vld [vmem:[%s1 + $0x28] sm:$0xff]
    %v65 = vld [vmem:[%s1 + $0x30] sm:$0xff]
    %v66 = vld [vmem:[%s1 + $0x38] sm:$0xff]
    %v67 = vld [vmem:[%s1 + $0x40] sm:$0xff]
    %v68 = vld [vmem:[%s1 + $0x48] sm:$0xff]
    %v69 = vld [vmem:[%s1 + $0x50] sm:$0xff]
    %v70 = vld [vmem:[%s1 + $0x58] sm:$0xff]
    %v71 = vld [vmem:[%s1 + $0x60] sm:$0xff]
    %v72 = vld [vmem:[%s1 + $0x68] sm:$0xff]
    %v73 = vld [vmem:[%s1 + $0x70] sm:$0xff]
    %v74 = vld [vmem:[%s1 + $0x78] sm:$0xff]
    %v75 = vld [vmem:[%s1 + $0x80] sm:$0xff]
    %v76 = vld [vmem:[%s1 + $0x88] sm:$0xff]
    %v77 = vld [vmem:[%s1 + $0x90] sm:$0xff]
    %v78 = vld [vmem:[%s1 + $0x98] sm:$0xff]
    %v79 = vld [vmem:[%s1 + $0xa0] sm:$0xff]
    %v80 = vld [vmem:[%s1 + $0xa8] sm:$0xff]
    %v81 = vld [vmem:[%s1 + $0xb0] sm:$0xff]
    %v82 = vld [vmem:[%s1 + $0xb8] sm:$0xff]
    %v83 = vld [vmem:[%s2] sm:$0x1]
    %v85 = vperm.slane %v83, 0
    %vm87 = vcmask 523264
    %v89 = vsel %vm87, %v28, 0
    %v92 = vsel %vm87, %v30, 0
    %v95 = vsel %vm87, %v32, 0
    %v98 = vsel %vm87, %v34, 0
    %v101 = vsel %vm87, %v36, 0
    %v104 = vsel %vm87, %v38, 0
    %v107 = vsel %vm87, %v40, 0
    %v110 = vsel %vm87, %v42, 0
    %v113 = vsel %vm87, %v44, 0
    %v116 = vsel %vm87, %v46, 0
    %v119 = vsel %vm87, %v48, 0
    %v122 = vsel %vm87, %v50, 0
    %v125 = vsel %vm87, %v52, 0
    %v128 = vsel %vm87, %v54, 0
    %v131 = vsel %vm87, %v56, 0
    %v134 = vsel %vm87, %v58, 0
    %136 = vmatpush.msra.mxu0 %v74
    %137 = vmatpush.msra.mxu0 %v73
    %138 = vmatpush.msra.mxu0 %v72
    %139 = vmatpush.msra.mxu0 %v71
    %140 = vmatpush.msra.mxu0 %v70
    %141 = vmatpush.msra.mxu0 %v69
    %142 = vmatpush.msra.mxu0 %v68
    %143 = vmatpush.msra.mxu0 %v67
    %144 = vmatpush.msra.mxu0 %v66
    %145 = vmatpush.msra.mxu0 %v65
    %146 = vmatpush.msra.mxu0 %v64
    %147 = vmatpush.msra.mxu0 %v63
    %148 = vmatpush.msra.mxu0 %v62
    %149 = vmatpush.msra.mxu0 %v61
    %150 = vmatpush.msra.mxu0 %v60
    %151 = vmatpush.msra.mxu0 %v59
    %152 = vmatmul.f32.gmra.mxu0 %v27
    %v153 = vpop.f32.mrf.mxu0
    %v154 = vadd.f32 %v85, %v153
    %155 = vmatmul.f32.gmra.mxu0 %v29
    %v156 = vpop.f32.mrf.mxu0
    %v157 = vadd.f32 %v85, %v156
    %158 = vmatmul.f32.gmra.mxu0 %v31
    %v159 = vpop.f32.mrf.mxu0
    %v160 = vadd.f32 %v85, %v159
    %161 = vmatmul.f32.gmra.mxu0 %v33
    %v162 = vpop.f32.mrf.mxu0
    %v163 = vadd.f32 %v85, %v162
    %164 = vmatmul.f32.gmra.mxu0 %v35
    %v165 = vpop.f32.mrf.mxu0
    %v166 = vadd.f32 %v85, %v165
    %167 = vmatmul.f32.gmra.mxu0 %v37
    %v168 = vpop.f32.mrf.mxu0
    %v169 = vadd.f32 %v85, %v168
    %170 = vmatmul.f32.gmra.mxu0 %v39
    %v171 = vpop.f32.mrf.mxu0
    %v172 = vadd.f32 %v85, %v171
    %173 = vmatmul.f32.gmra.mxu0 %v41
    %v174 = vpop.f32.mrf.mxu0
    %v175 = vadd.f32 %v85, %v174
    %176 = vmatmul.f32.gmra.mxu0 %v43
    %v177 = vpop.f32.mrf.mxu0
    %v178 = vadd.f32 %v85, %v177
    %179 = vmatmul.f32.gmra.mxu0 %v45
    %v180 = vpop.f32.mrf.mxu0
    %v181 = vadd.f32 %v85, %v180
    %182 = vmatmul.f32.gmra.mxu0 %v47
    %v183 = vpop.f32.mrf.mxu0
    %v184 = vadd.f32 %v85, %v183
    %185 = vmatmul.f32.gmra.mxu0 %v49
    %v186 = vpop.f32.mrf.mxu0
    %v187 = vadd.f32 %v85, %v186
    %188 = vmatmul.f32.gmra.mxu0 %v51
    %v189 = vpop.f32.mrf.mxu0
    %v190 = vadd.f32 %v85, %v189
    %191 = vmatmul.f32.gmra.mxu0 %v53
    %v192 = vpop.f32.mrf.mxu0
    %v193 = vadd.f32 %v85, %v192
    %194 = vmatmul.f32.gmra.mxu0 %v55
    %v195 = vpop.f32.mrf.mxu0
    %v196 = vadd.f32 %v85, %v195
    %197 = vmatmul.f32.gmra.mxu0 %v57
    %v198 = vpop.f32.mrf.mxu0
    %v199 = vadd.f32 %v85, %v198
    %200 = vdwg.mxu0
    %201 = vmatpush.msra.mxu0 0.0
    %202 = vmatpush.msra.mxu0 0.0
    %203 = vmatpush.msra.mxu0 0.0
    %204 = vmatpush.msra.mxu0 0.0
    %205 = vmatpush.msra.mxu0 0.0
    %206 = vmatpush.msra.mxu0 0.0
    %207 = vmatpush.msra.mxu0 0.0
    %208 = vmatpush.msra.mxu0 0.0
    %209 = vmatpush.msra.mxu0 %v82
    %210 = vmatpush.msra.mxu0 %v81
    %211 = vmatpush.msra.mxu0 %v80
    %212 = vmatpush.msra.mxu0 %v79
    %213 = vmatpush.msra.mxu0 %v78
    %214 = vmatpush.msra.mxu0 %v77
    %215 = vmatpush.msra.mxu0 %v76
    %216 = vmatpush.msra.mxu0 %v75
    %217 = vmatmul.f32.gmra.mxu0 %v89
    %v218 = vpop.f32.mrf.mxu0
    %v219 = vadd.f32 %v154, %v218
    %220 = vmatmul.f32.gmra.mxu0 %v92
    %v221 = vpop.f32.mrf.mxu0
    %v222 = vadd.f32 %v157, %v221
    %223 = vmatmul.f32.gmra.mxu0 %v95
    %v224 = vpop.f32.mrf.mxu0
    %v225 = vadd.f32 %v160, %v224
    %226 = vmatmul.f32.gmra.mxu0 %v98
    %v227 = vpop.f32.mrf.mxu0
    %v228 = vadd.f32 %v163, %v227
    %229 = vmatmul.f32.gmra.mxu0 %v101
    %v230 = vpop.f32.mrf.mxu0
    %v231 = vadd.f32 %v166, %v230
    %232 = vmatmul.f32.gmra.mxu0 %v104
    %v233 = vpop.f32.mrf.mxu0
    %v234 = vadd.f32 %v169, %v233
    %235 = vmatmul.f32.gmra.mxu0 %v107
    %v236 = vpop.f32.mrf.mxu0
    %v237 = vadd.f32 %v172, %v236
    %238 = vmatmul.f32.gmra.mxu0 %v110
    %v239 = vpop.f32.mrf.mxu0
    %v240 = vadd.f32 %v175, %v239
    %241 = vmatmul.f32.gmra.mxu0 %v113
    %v242 = vpop.f32.mrf.mxu0
    %v243 = vadd.f32 %v178, %v242
    %244 = vmatmul.f32.gmra.mxu0 %v116
    %v245 = vpop.f32.mrf.mxu0
    %v246 = vadd.f32 %v181, %v245
    %247 = vmatmul.f32.gmra.mxu0 %v119
    %v248 = vpop.f32.mrf.mxu0
    %v249 = vadd.f32 %v184, %v248
    %250 = vmatmul.f32.gmra.mxu0 %v122
    %v251 = vpop.f32.mrf.mxu0
    %v252 = vadd.f32 %v187, %v251
    %253 = vmatmul.f32.gmra.mxu0 %v125
    %v254 = vpop.f32.mrf.mxu0
    %v255 = vadd.f32 %v190, %v254
    %256 = vmatmul.f32.gmra.mxu0 %v128
    %v257 = vpop.f32.mrf.mxu0
    %v258 = vadd.f32 %v193, %v257
    %259 = vmatmul.f32.gmra.mxu0 %v131
    %v260 = vpop.f32.mrf.mxu0
    %v261 = vadd.f32 %v196, %v260
    %262 = vmatmul.f32.gmra.mxu0 %v134
    %v263 = vpop.f32.mrf.mxu0
    %v264 = vadd.f32 %v199, %v263
    %265 = vdwg.mxu0
    %v266 = vmax.f32 %v219, 0.0
    %v267 = vmax.f32 %v222, 0.0
    %v268 = vmax.f32 %v225, 0.0
    %v269 = vmax.f32 %v228, 0.0
    %v270 = vmax.f32 %v231, 0.0
    %v271 = vmax.f32 %v234, 0.0
    %v272 = vmax.f32 %v237, 0.0
    %v273 = vmax.f32 %v240, 0.0
    %v274 = vmax.f32 %v243, 0.0
    %v275 = vmax.f32 %v246, 0.0
    %v276 = vmax.f32 %v249, 0.0
    %v277 = vmax.f32 %v252, 0.0
    %v278 = vmax.f32 %v255, 0.0
    %v279 = vmax.f32 %v258, 0.0
    %v280 = vmax.f32 %v261, 0.0
    %v281 = vmax.f32 %v264, 0.0
    %vm282 = vcmask 261120
    %283 = vst.msk [vmem:[#allocation2] sm:$0xff] %vm282, %v266
    %284 = vst.msk [vmem:[#allocation2 + $0x8] sm:$0xff] %vm282, %v267
    %285 = vst.msk [vmem:[#allocation2 + $0x10] sm:$0xff] %vm282, %v268
    %286 = vst.msk [vmem:[#allocation2 + $0x18] sm:$0xff] %vm282, %v269
    %291 = vrot.lane.b32.xlu0 %v270, 32
    %v292 = vpop.permute.xlu0 %291
    %293 = vrot.lane.b32.xlu0 %v271, 32
    %v294 = vpop.permute.xlu0 %293
    %295 = vrot.lane.b32.xlu0 %v272, 32
    %v296 = vpop.permute.xlu0 %295
    %297 = vrot.lane.b32.xlu0 %v273, 32
    %v298 = vpop.permute.xlu0 %297
    %vm303 = vcmask 523520
    %304 = vst.msk [vmem:[#allocation2] sm:$0xff] %vm303, %v292
    %305 = vst.msk [vmem:[#allocation2 + $0x8] sm:$0xff] %vm303, %v294
    %306 = vst.msk [vmem:[#allocation2 + $0x10] sm:$0xff] %vm303, %v296
    %307 = vst.msk [vmem:[#allocation2 + $0x18] sm:$0xff] %vm303, %v298
    %312 = vrot.lane.b32.xlu0 %v274, 64
    %v313 = vpop.permute.xlu0 %312
    %314 = vrot.lane.b32.xlu0 %v275, 64
    %v315 = vpop.permute.xlu0 %314
    %316 = vrot.lane.b32.xlu0 %v276, 64
    %v317 = vpop.permute.xlu0 %316
    %318 = vrot.lane.b32.xlu0 %v277, 64
    %v319 = vpop.permute.xlu0 %318
    %vm324 = vcmask 785920
    %325 = vst.msk [vmem:[#allocation2] sm:$0xff] %vm324, %v313
    %326 = vst.msk [vmem:[#allocation2 + $0x8] sm:$0xff] %vm324, %v315
    %327 = vst.msk [vmem:[#allocation2 + $0x10] sm:$0xff] %vm324, %v317
    %328 = vst.msk [vmem:[#allocation2 + $0x18] sm:$0xff] %vm324, %v319
    %333 = vrot.lane.b32.xlu0 %v278, 96
    %v334 = vpop.permute.xlu0 %333
    %335 = vrot.lane.b32.xlu0 %v279, 96
    %v336 = vpop.permute.xlu0 %335
    %337 = vrot.lane.b32.xlu0 %v280, 96
    %v338 = vpop.permute.xlu0 %337
    %339 = vrot.lane.b32.xlu0 %v281, 96
    %v340 = vpop.permute.xlu0 %339
    %vm345 = vcmask 1048320
    %346 = vst.msk [vmem:[#allocation2] sm:$0xff] %vm345, %v334
    %347 = vst.msk [vmem:[#allocation2 + $0x8] sm:$0xff] %vm345, %v336
    %348 = vst.msk [vmem:[#allocation2 + $0x10] sm:$0xff] %vm345, %v338
    %349 = vst.msk [vmem:[#allocation2 + $0x18] sm:$0xff] %vm345, %v340
    %v350 = vld [vmem:[#allocation2] sm:$0x7]
    %351 = vst [vmem:[#allocation3] sm:$0x7] %v350
    %v352 = vld [vmem:[#allocation2 + $0x1] sm:$0x7]
    %353 = vst [vmem:[#allocation3 + $0x8] sm:$0x7] %v352
    %v354 = vld [vmem:[#allocation2 + $0x4] sm:$0x7]
    %355 = vst [vmem:[#allocation3 + $0x10] sm:$0x7] %v354
    %v356 = vld [vmem:[#allocation2 + $0x5] sm:$0x7]
    %357 = vst [vmem:[#allocation3 + $0x18] sm:$0x7] %v356
    %v358 = vld [vmem:[#allocation2 + $0x4] sm:$0x7]
    %v360 = vrot.slane %v358, 5
    %362 = vst [vmem:[#allocation3] sm:$0x38] %v360
    %v363 = vld [vmem:[#allocation2 + $0x5] sm:$0x7]
    %v365 = vrot.slane %v363, 5
    %367 = vst [vmem:[#allocation3 + $0x8] sm:$0x38] %v365
    %v368 = vld [vmem:[#allocation2 + $0x8] sm:$0x7]
    %v370 = vrot.slane %v368, 5
    %372 = vst [vmem:[#allocation3 + $0x10] sm:$0x38] %v370
    %v373 = vld [vmem:[#allocation2 + $0x9] sm:$0x7]
    %v375 = vrot.slane %v373, 5
    %377 = vst [vmem:[#allocation3 + $0x18] sm:$0x38] %v375
    %v378 = vld [vmem:[#allocation2 + $0x8] sm:$0x7]
    %v380 = vrot.slane %v378, 2
    %382 = vst [vmem:[#allocation3] sm:$0xc0] %v380
    %383 = vst [vmem:[#allocation3 + $0x20] sm:$0x1] %v380
    %v384 = vld [vmem:[#allocation2 + $0x9] sm:$0x7]
    %v386 = vrot.slane %v384, 2
    %388 = vst [vmem:[#allocation3 + $0x8] sm:$0xc0] %v386
    %389 = vst [vmem:[#allocation3 + $0x28] sm:$0x1] %v386
    %v390 = vld [vmem:[#allocation2 + $0xc] sm:$0x7]
    %v392 = vrot.slane %v390, 2
    %394 = vst [vmem:[#allocation3 + $0x10] sm:$0xc0] %v392
    %395 = vst [vmem:[#allocation3 + $0x30] sm:$0x1] %v392
    %v396 = vld [vmem:[#allocation2 + $0xd] sm:$0x7]
    %v398 = vrot.slane %v396, 2
    %400 = vst [vmem:[#allocation3 + $0x18] sm:$0xc0] %v398
    %401 = vst [vmem:[#allocation3 + $0x38] sm:$0x1] %v398
    %v402 = vld [vmem:[#allocation2 + $0x10] sm:$0x7]
    %v404 = vrot.slane %v402, 7
    %406 = vst [vmem:[#allocation3 + $0x20] sm:$0xe] %v404
    %v407 = vld [vmem:[#allocation2 + $0x11] sm:$0x7]
    %v409 = vrot.slane %v407, 7
    %411 = vst [vmem:[#allocation3 + $0x28] sm:$0xe] %v409
    %v412 = vld [vmem:[#allocation2 + $0x14] sm:$0x7]
    %v414 = vrot.slane %v412, 7
    %416 = vst [vmem:[#allocation3 + $0x30] sm:$0xe] %v414
    %v417 = vld [vmem:[#allocation2 + $0x15] sm:$0x7]
    %v419 = vrot.slane %v417, 7
    %421 = vst [vmem:[#allocation3 + $0x38] sm:$0xe] %v419
    %v422 = vld [vmem:[#allocation2 + $0x14] sm:$0x7]
    %v424 = vrot.slane %v422, 4
    %426 = vst [vmem:[#allocation3 + $0x20] sm:$0x70] %v424
    %v427 = vld [vmem:[#allocation2 + $0x15] sm:$0x7]
    %v429 = vrot.slane %v427, 4
    %431 = vst [vmem:[#allocation3 + $0x28] sm:$0x70] %v429
    %v432 = vld [vmem:[#allocation2 + $0x18] sm:$0x7]
    %v434 = vrot.slane %v432, 4
    %436 = vst [vmem:[#allocation3 + $0x30] sm:$0x70] %v434
    %v437 = vld [vmem:[#allocation2 + $0x19] sm:$0x7]
    %v439 = vrot.slane %v437, 4
    %441 = vst [vmem:[#allocation3 + $0x38] sm:$0x70] %v439
    %v442 = vld [vmem:[#allocation2 + $0x18] sm:$0x7]
    %v444 = vrot.slane %v442, 1
    %446 = vst [vmem:[#allocation3 + $0x20] sm:$0x80] %v444
    %447 = vst [vmem:[#allocation3 + $0x40] sm:$0x3] %v444
    %v448 = vld [vmem:[#allocation2 + $0x19] sm:$0x7]
    %v450 = vrot.slane %v448, 1
    %452 = vst [vmem:[#allocation3 + $0x28] sm:$0x80] %v450
    %453 = vst [vmem:[#allocation3 + $0x48] sm:$0x3] %v450
    %v454 = vld [vmem:[#allocation2 + $0x1c] sm:$0x7]
    %v456 = vrot.slane %v454, 1
    %458 = vst [vmem:[#allocation3 + $0x30] sm:$0x80] %v456
    %459 = vst [vmem:[#allocation3 + $0x50] sm:$0x3] %v456
    %v460 = vld [vmem:[#allocation2 + $0x1d] sm:$0x7]
    %v462 = vrot.slane %v460, 1
    %464 = vst [vmem:[#allocation3 + $0x38] sm:$0x80] %v462
    %465 = vst [vmem:[#allocation3 + $0x58] sm:$0x3] %v462
    %v466 = vld [vmem:[#allocation3] sm:$0xff]
    %v467 = vld [vmem:[#allocation3 + $0x8] sm:$0xff]
    %v468 = vld [vmem:[#allocation3 + $0x10] sm:$0xff]
    %v469 = vld [vmem:[#allocation3 + $0x18] sm:$0xff]
    %v470 = vld [vmem:[#allocation3 + $0x20] sm:$0xff]
    %v471 = vld [vmem:[#allocation3 + $0x28] sm:$0xff]
    %v472 = vld [vmem:[#allocation3 + $0x30] sm:$0xff]
    %v473 = vld [vmem:[#allocation3 + $0x38] sm:$0xff]
    %v474 = vld [vmem:[#allocation3 + $0x40] sm:$0x3]
    %v475 = vld [vmem:[#allocation3 + $0x48] sm:$0x3]
    %v476 = vld [vmem:[#allocation3 + $0x50] sm:$0x3]
    %v477 = vld [vmem:[#allocation3 + $0x58] sm:$0x3]
    %v478 = vld [vmem:[%s3] sm:$0xff]
    %v479 = vld [vmem:[%s3 + $0x8] sm:$0xff]
    %v480 = vld [vmem:[%s3 + $0x10] sm:$0xff]
    %v481 = vld [vmem:[%s3 + $0x18] sm:$0xff]
    %v482 = vld [vmem:[%s3 + $0x20] sm:$0xff]
    %v483 = vld [vmem:[%s3 + $0x28] sm:$0xff]
    %v484 = vld [vmem:[%s3 + $0x30] sm:$0xff]
    %v485 = vld [vmem:[%s3 + $0x38] sm:$0xff]
    %v486 = vld [vmem:[%s3 + $0x40] sm:$0xff]
    %v487 = vld [vmem:[%s3 + $0x48] sm:$0xff]
    %v488 = vld [vmem:[%s3 + $0x50] sm:$0xff]
    %v489 = vld [vmem:[%s3 + $0x58] sm:$0xff]
    %v490 = vld [vmem:[%s3 + $0x60] sm:$0xff]
    %v491 = vld [vmem:[%s3 + $0x68] sm:$0xff]
    %v492 = vld [vmem:[%s3 + $0x70] sm:$0xff]
    %v493 = vld [vmem:[%s3 + $0x78] sm:$0xff]
    %v494 = vld [vmem:[%s3 + $0x80] sm:$0xff]
    %v495 = vld [vmem:[%s3 + $0x88] sm:$0xff]
    %v496 = vld [vmem:[%s3 + $0x90] sm:$0xff]
    %v497 = vld [vmem:[%s3 + $0x98] sm:$0xff]
    %v498 = vld [vmem:[%s3 + $0xa0] sm:$0xff]
    %v499 = vld [vmem:[%s3 + $0xa8] sm:$0xff]
    %v500 = vld [vmem:[%s3 + $0xb0] sm:$0xff]
    %v501 = vld [vmem:[%s3 + $0xb8] sm:$0xff]
    %v502 = vld [vmem:[%s3 + $0xc0] sm:$0xff]
    %v503 = vld [vmem:[%s3 + $0xc8] sm:$0xff]
    %v504 = vld [vmem:[%s3 + $0xd0] sm:$0xff]
    %v505 = vld [vmem:[%s3 + $0xd8] sm:$0xff]
    %v506 = vld [vmem:[%s3 + $0xe0] sm:$0xff]
    %v507 = vld [vmem:[%s3 + $0xe8] sm:$0xff]
    %v508 = vld [vmem:[%s3 + $0xf0] sm:$0xff]
    %v509 = vld [vmem:[%s3 + $0xf8] sm:$0xff]
    %v510 = vld [vmem:[%s3 + $0x100] sm:$0xff]
    %v511 = vld [vmem:[%s3 + $0x108] sm:$0xff]
    %v512 = vld [vmem:[%s3 + $0x110] sm:$0xff]
    %v513 = vld [vmem:[%s3 + $0x118] sm:$0xff]
    %v514 = vld [vmem:[%s3 + $0x120] sm:$0xff]
    %v515 = vld [vmem:[%s3 + $0x128] sm:$0xff]
    %v516 = vld [vmem:[%s3 + $0x130] sm:$0xff]
    %v517 = vld [vmem:[%s3 + $0x138] sm:$0xff]
    %v518 = vld [vmem:[%s3 + $0x140] sm:$0xff]
    %v519 = vld [vmem:[%s3 + $0x148] sm:$0xff]
    %v520 = vld [vmem:[%s3 + $0x150] sm:$0xff]
    %v521 = vld [vmem:[%s3 + $0x158] sm:$0xff]
    %v522 = vld [vmem:[%s3 + $0x160] sm:$0xff]
    %v523 = vld [vmem:[%s3 + $0x168] sm:$0xff]
    %v524 = vld [vmem:[%s3 + $0x170] sm:$0xff]
    %v525 = vld [vmem:[%s3 + $0x178] sm:$0xff]
    %v526 = vld [vmem:[%s3 + $0x180] sm:$0xff]
    %v527 = vld [vmem:[%s3 + $0x188] sm:$0xff]
    %v528 = vld [vmem:[%s3 + $0x190] sm:$0xff]
    %v529 = vld [vmem:[%s3 + $0x198] sm:$0xff]
    %v530 = vld [vmem:[%s3 + $0x1a0] sm:$0xff]
    %v531 = vld [vmem:[%s3 + $0x1a8] sm:$0xff]
    %v532 = vld [vmem:[%s3 + $0x1b0] sm:$0xff]
    %v533 = vld [vmem:[%s3 + $0x1b8] sm:$0xff]
    %v534 = vld [vmem:[%s3 + $0x1c0] sm:$0xff]
    %v535 = vld [vmem:[%s3 + $0x1c8] sm:$0xff]
    %v536 = vld [vmem:[%s3 + $0x1d0] sm:$0xff]
    %v537 = vld [vmem:[%s3 + $0x1d8] sm:$0xff]
    %v538 = vld [vmem:[%s3 + $0x1e0] sm:$0xff]
    %v539 = vld [vmem:[%s3 + $0x1e8] sm:$0xff]
    %v540 = vld [vmem:[%s3 + $0x1f0] sm:$0xff]
    %v541 = vld [vmem:[%s3 + $0x1f8] sm:$0xff]
    %v542 = vld [vmem:[%s4] sm:$0x1]
    %v544 = vperm.slane %v542, 0
    %546 = vmatpush.msra.mxu0 %v493
    %547 = vmatpush.msra.mxu0 %v492
    %548 = vmatpush.msra.mxu0 %v491
    %549 = vmatpush.msra.mxu0 %v490
    %550 = vmatpush.msra.mxu0 %v489
    %551 = vmatpush.msra.mxu0 %v488
    %552 = vmatpush.msra.mxu0 %v487
    %553 = vmatpush.msra.mxu0 %v486
    %554 = vmatpush.msra.mxu0 %v485
    %555 = vmatpush.msra.mxu0 %v484
    %556 = vmatpush.msra.mxu0 %v483
    %557 = vmatpush.msra.mxu0 %v482
    %558 = vmatpush.msra.mxu0 %v481
    %559 = vmatpush.msra.mxu0 %v480
    %560 = vmatpush.msra.mxu0 %v479
    %561 = vmatpush.msra.mxu0 %v478
    %562 = vmatmul.f32.gmra.mxu0 %v466
    %v563 = vpop.f32.mrf.mxu0
    %v564 = vadd.f32 %v544, %v563
    %565 = vmatmul.f32.gmra.mxu0 %v470
    %v566 = vpop.f32.mrf.mxu0
    %v567 = vadd.f32 %v544, %v566
    %568 = vmatmul.f32.gmra.mxu0 %v474
    %v569 = vpop.f32.mrf.mxu0
    %v570 = vadd.f32 %v544, %v569
    %571 = vdwg.mxu0
    %572 = vmatpush.msra.mxu0 %v509
    %573 = vmatpush.msra.mxu0 %v508
    %574 = vmatpush.msra.mxu0 %v507
    %575 = vmatpush.msra.mxu0 %v506
    %576 = vmatpush.msra.mxu0 %v505
    %577 = vmatpush.msra.mxu0 %v504
    %578 = vmatpush.msra.mxu0 %v503
    %579 = vmatpush.msra.mxu0 %v502
    %580 = vmatpush.msra.mxu0 %v501
    %581 = vmatpush.msra.mxu0 %v500
    %582 = vmatpush.msra.mxu0 %v499
    %583 = vmatpush.msra.mxu0 %v498
    %584 = vmatpush.msra.mxu0 %v497
    %585 = vmatpush.msra.mxu0 %v496
    %586 = vmatpush.msra.mxu0 %v495
    %587 = vmatpush.msra.mxu0 %v494
    %588 = vmatmul.f32.gmra.mxu0 %v467
    %v589 = vpop.f32.mrf.mxu0
    %v590 = vadd.f32 %v564, %v589
    %591 = vmatmul.f32.gmra.mxu0 %v471
    %v592 = vpop.f32.mrf.mxu0
    %v593 = vadd.f32 %v567, %v592
    %594 = vmatmul.f32.gmra.mxu0 %v475
    %v595 = vpop.f32.mrf.mxu0
    %v596 = vadd.f32 %v570, %v595
    %597 = vdwg.mxu0
    %598 = vmatpush.msra.mxu0 %v525
    %599 = vmatpush.msra.mxu0 %v524
    %600 = vmatpush.msra.mxu0 %v523
    %601 = vmatpush.msra.mxu0 %v522
    %602 = vmatpush.msra.mxu0 %v521
    %603 = vmatpush.msra.mxu0 %v520
    %604 = vmatpush.msra.mxu0 %v519
    %605 = vmatpush.msra.mxu0 %v518
    %606 = vmatpush.msra.mxu0 %v517
    %607 = vmatpush.msra.mxu0 %v516
    %608 = vmatpush.msra.mxu0 %v515
    %609 = vmatpush.msra.mxu0 %v514
    %610 = vmatpush.msra.mxu0 %v513
    %611 = vmatpush.msra.mxu0 %v512
    %612 = vmatpush.msra.mxu0 %v511
    %613 = vmatpush.msra.mxu0 %v510
    %614 = vmatmul.f32.gmra.mxu0 %v468
    %v615 = vpop.f32.mrf.mxu0
    %v616 = vadd.f32 %v590, %v615
    %617 = vmatmul.f32.gmra.mxu0 %v472
    %v618 = vpop.f32.mrf.mxu0
    %v619 = vadd.f32 %v593, %v618
    %620 = vmatmul.f32.gmra.mxu0 %v476
    %v621 = vpop.f32.mrf.mxu0
    %v622 = vadd.f32 %v596, %v621
    %623 = vdwg.mxu0
    %624 = vmatpush.msra.mxu0 %v541
    %625 = vmatpush.msra.mxu0 %v540
    %626 = vmatpush.msra.mxu0 %v539
    %627 = vmatpush.msra.mxu0 %v538
    %628 = vmatpush.msra.mxu0 %v537
    %629 = vmatpush.msra.mxu0 %v536
    %630 = vmatpush.msra.mxu0 %v535
    %631 = vmatpush.msra.mxu0 %v534
    %632 = vmatpush.msra.mxu0 %v533
    %633 = vmatpush.msra.mxu0 %v532
    %634 = vmatpush.msra.mxu0 %v531
    %635 = vmatpush.msra.mxu0 %v530
    %636 = vmatpush.msra.mxu0 %v529
    %637 = vmatpush.msra.mxu0 %v528
    %638 = vmatpush.msra.mxu0 %v527
    %639 = vmatpush.msra.mxu0 %v526
    %640 = vmatmul.f32.gmra.mxu0 %v469
    %v641 = vpop.f32.mrf.mxu0
    %v642 = vadd.f32 %v616, %v641
    %643 = vmatmul.f32.gmra.mxu0 %v473
    %v644 = vpop.f32.mrf.mxu0
    %v645 = vadd.f32 %v619, %v644
    %646 = vmatmul.f32.gmra.mxu0 %v477
    %v647 = vpop.f32.mrf.mxu0
    %v648 = vadd.f32 %v622, %v647
    %649 = vdwg.mxu0
    %v650 = vmax.f32 %v642, 0.0
    %v651 = vmax.f32 %v645, 0.0
    %v652 = vmax.f32 %v648, 0.0
    %653 = vst.msk [vmem:[#allocation4] sm:$0xff] %vm87, %v650
    %654 = vst.msk [vmem:[#allocation4 + $0x8] sm:$0xff] %vm87, %v651
    %vm655 = vcmask 517120
    %656 = vst.msk [vmem:[#allocation4 + $0x10] sm:$0x3] %vm655, %v652
    %v657 = vld [vmem:[#allocation4] sm:$0x1]
    %vm658 = vcmask 516096
    %659 = vst.msk [vmem:[#allocation5] sm:$0x1] %vm658, %v657
    %v660 = vld [vmem:[#allocation4 + $0x1] sm:$0x1]
    %662 = vrot.lane.b32.xlu0 %v660, 64
    %v663 = vpop.permute.xlu0 %662
    %vm665 = vcmask 1040896
    %666 = vst.msk [vmem:[#allocation5] sm:$0x1] %vm665, %v663
    %v667 = vld [vmem:[#allocation4 + $0x2] sm:$0x1]
    %668 = vst.msk [vmem:[#allocation5 + $0x2] sm:$0x1] %vm658, %v667
    %v669 = vld [vmem:[#allocation4 + $0x3] sm:$0x1]
    %671 = vrot.lane.b32.xlu0 %v669, 64
    %v672 = vpop.permute.xlu0 %671
    %674 = vst.msk [vmem:[#allocation5 + $0x2] sm:$0x1] %vm665, %v672
    %v675 = vld [vmem:[#allocation4 + $0x4] sm:$0x1]
    %676 = vst.msk [vmem:[#allocation5 + $0x4] sm:$0x1] %vm658, %v675
    %v677 = vld [vmem:[#allocation4 + $0x5] sm:$0x1]
    %679 = vrot.lane.b32.xlu0 %v677, 64
    %v680 = vpop.permute.xlu0 %679
    %682 = vst.msk [vmem:[#allocation5 + $0x4] sm:$0x1] %vm665, %v680
    %v683 = vld [vmem:[#allocation4 + $0x6] sm:$0x1]
    %684 = vst.msk [vmem:[#allocation5 + $0x6] sm:$0x1] %vm658, %v683
    %v685 = vld [vmem:[#allocation4 + $0x7] sm:$0x1]
    %687 = vrot.lane.b32.xlu0 %v685, 64
    %v688 = vpop.permute.xlu0 %687
    %690 = vst.msk [vmem:[#allocation5 + $0x6] sm:$0x1] %vm665, %v688
    %v691 = vld [vmem:[#allocation4 + $0x8] sm:$0x1]
    %692 = vst.msk [vmem:[#allocation5 + $0x8] sm:$0x1] %vm658, %v691
    %v693 = vld [vmem:[#allocation4 + $0x9] sm:$0x1]
    %694 = vst.msk [vmem:[#allocation5 + $0x1] sm:$0x1] %vm658, %v693
    %v695 = vld [vmem:[#allocation4 + $0xa] sm:$0x1]
    %697 = vrot.lane.b32.xlu0 %v695, 64
    %v698 = vpop.permute.xlu0 %697
    %700 = vst.msk [vmem:[#allocation5 + $0x1] sm:$0x1] %vm665, %v698
    %v701 = vld [vmem:[#allocation4 + $0xb] sm:$0x1]
    %702 = vst.msk [vmem:[#allocation5 + $0x3] sm:$0x1] %vm658, %v701
    %v703 = vld [vmem:[#allocation4 + $0xc] sm:$0x1]
    %705 = vrot.lane.b32.xlu0 %v703, 64
    %v706 = vpop.permute.xlu0 %705
    %708 = vst.msk [vmem:[#allocation5 + $0x3] sm:$0x1] %vm665, %v706
    %v709 = vld [vmem:[#allocation4 + $0xd] sm:$0x1]
    %710 = vst.msk [vmem:[#allocation5 + $0x5] sm:$0x1] %vm658, %v709
    %v711 = vld [vmem:[#allocation4 + $0xe] sm:$0x1]
    %713 = vrot.lane.b32.xlu0 %v711, 64
    %v714 = vpop.permute.xlu0 %713
    %716 = vst.msk [vmem:[#allocation5 + $0x5] sm:$0x1] %vm665, %v714
    %v717 = vld [vmem:[#allocation4 + $0xf] sm:$0x1]
    %718 = vst.msk [vmem:[#allocation5 + $0x7] sm:$0x1] %vm658, %v717
    %v719 = vld [vmem:[#allocation4 + $0x10] sm:$0x1]
    %721 = vrot.lane.b32.xlu0 %v719, 64
    %v722 = vpop.permute.xlu0 %721
    %724 = vst.msk [vmem:[#allocation5 + $0x7] sm:$0x1] %vm665, %v722
    %v725 = vld [vmem:[#allocation4 + $0x11] sm:$0x1]
    %726 = vst.msk [vmem:[#allocation5 + $0x9] sm:$0x1] %vm658, %v725
    %v727 = vld [vmem:[#allocation5] sm:$0xff]
    %v728 = vld [vmem:[#allocation5 + $0x8] sm:$0x3]
    %v729 = vld [vmem:[%s5] sm:$0xff]
    %v730 = vld [vmem:[%s5 + $0x8] sm:$0xff]
    %v731 = vld [vmem:[%s5 + $0x10] sm:$0xff]
    %v732 = vld [vmem:[%s5 + $0x18] sm:$0xff]
    %v733 = vld [vmem:[%s5 + $0x20] sm:$0xff]
    %v734 = vld [vmem:[%s5 + $0x28] sm:$0xff]
    %v735 = vld [vmem:[%s5 + $0x30] sm:$0xff]
    %v736 = vld [vmem:[%s5 + $0x38] sm:$0xff]
    %v737 = vld [vmem:[%s5 + $0x40] sm:$0xff]
    %v738 = vld [vmem:[%s5 + $0x48] sm:$0xff]
    %v739 = vld [vmem:[%s5 + $0x50] sm:$0xff]
    %v740 = vld [vmem:[%s5 + $0x58] sm:$0xff]
    %v741 = vld [vmem:[%s5 + $0x60] sm:$0xff]
    %v742 = vld [vmem:[%s5 + $0x68] sm:$0xff]
    %v743 = vld [vmem:[%s5 + $0x70] sm:$0xff]
    %v744 = vld [vmem:[%s5 + $0x78] sm:$0xff]
    %v745 = vld [vmem:[%s5 + $0x80] sm:$0xff]
    %v746 = vld [vmem:[%s5 + $0x88] sm:$0xff]
    %v747 = vld [vmem:[%s5 + $0x90] sm:$0xff]
    %v748 = vld [vmem:[%s5 + $0x98] sm:$0xff]
    %v749 = vld [vmem:[%s5 + $0xa0] sm:$0xff]
    %v750 = vld [vmem:[%s5 + $0xa8] sm:$0xff]
    %v751 = vld [vmem:[%s5 + $0xb0] sm:$0xff]
    %v752 = vld [vmem:[%s5 + $0xb8] sm:$0xff]
    %v753 = vld [vmem:[%s5 + $0xc0] sm:$0xff]
    %v754 = vld [vmem:[%s5 + $0xc8] sm:$0xff]
    %v755 = vld [vmem:[%s5 + $0xd0] sm:$0xff]
    %v756 = vld [vmem:[%s5 + $0xd8] sm:$0xff]
    %v757 = vld [vmem:[%s5 + $0xe0] sm:$0xff]
    %v758 = vld [vmem:[%s5 + $0xe8] sm:$0xff]
    %v759 = vld [vmem:[%s5 + $0xf0] sm:$0xff]
    %v760 = vld [vmem:[%s5 + $0xf8] sm:$0xff]
    %v761 = vld [vmem:[%s5 + $0x100] sm:$0xff]
    %v762 = vld [vmem:[%s5 + $0x108] sm:$0xff]
    %v763 = vld [vmem:[%s5 + $0x110] sm:$0xff]
    %v764 = vld [vmem:[%s5 + $0x118] sm:$0xff]
    %v765 = vld [vmem:[%s5 + $0x120] sm:$0xff]
    %v766 = vld [vmem:[%s5 + $0x128] sm:$0xff]
    %v767 = vld [vmem:[%s5 + $0x130] sm:$0xff]
    %v768 = vld [vmem:[%s5 + $0x138] sm:$0xff]
    %v769 = vld [vmem:[%s5 + $0x140] sm:$0xff]
    %v770 = vld [vmem:[%s5 + $0x148] sm:$0xff]
    %v771 = vld [vmem:[%s5 + $0x150] sm:$0xff]
    %v772 = vld [vmem:[%s5 + $0x158] sm:$0xff]
    %v773 = vld [vmem:[%s5 + $0x160] sm:$0xff]
    %v774 = vld [vmem:[%s5 + $0x168] sm:$0xff]
    %v775 = vld [vmem:[%s5 + $0x170] sm:$0xff]
    %v776 = vld [vmem:[%s5 + $0x178] sm:$0xff]
    %v777 = vld [vmem:[%s5 + $0x180] sm:$0xff]
    %v778 = vld [vmem:[%s5 + $0x188] sm:$0xff]
    %v779 = vld [vmem:[%s5 + $0x190] sm:$0xff]
    %v780 = vld [vmem:[%s5 + $0x198] sm:$0xff]
    %v781 = vld [vmem:[%s5 + $0x1a0] sm:$0xff]
    %v782 = vld [vmem:[%s5 + $0x1a8] sm:$0xff]
    %v783 = vld [vmem:[%s5 + $0x1b0] sm:$0xff]
    %v784 = vld [vmem:[%s5 + $0x1b8] sm:$0xff]
    %v785 = vld [vmem:[%s5 + $0x1c0] sm:$0xff]
    %v786 = vld [vmem:[%s5 + $0x1c8] sm:$0xff]
    %v787 = vld [vmem:[%s5 + $0x1d0] sm:$0xff]
    %v788 = vld [vmem:[%s5 + $0x1d8] sm:$0xff]
    %v789 = vld [vmem:[%s5 + $0x1e0] sm:$0xff]
    %v790 = vld [vmem:[%s5 + $0x1e8] sm:$0xff]
    %v791 = vld [vmem:[%s5 + $0x1f0] sm:$0xff]
    %v792 = vld [vmem:[%s5 + $0x1f8] sm:$0xff]
    %v793 = vld [vmem:[%s5 + $0x200] sm:$0xff]
    %v794 = vld [vmem:[%s5 + $0x208] sm:$0xff]
    %v795 = vld [vmem:[%s5 + $0x210] sm:$0xff]
    %v796 = vld [vmem:[%s5 + $0x218] sm:$0xff]
    %v797 = vld [vmem:[%s5 + $0x220] sm:$0xff]
    %v798 = vld [vmem:[%s5 + $0x228] sm:$0xff]
    %v799 = vld [vmem:[%s5 + $0x230] sm:$0xff]
    %v800 = vld [vmem:[%s5 + $0x238] sm:$0xff]
    %v801 = vld [vmem:[%s6] sm:$0x1]
    %v803 = vperm.slane %v801, 0
    %807 = vst [vmem:[#allocation1] ss:$4 sm:$0xff] %v727
    %s808 = scalar_lea.vmem [#allocation1], 32
    %809 = vst [vmem:[%s808] ss:$4 sm:$0xff] %v728
    %v810 = vld.sshfl [vmem:[#allocation1] sm:$0xff pattern:$0x73625140]
    %v811 = vld.sshfl [vmem:[#allocation1 + $0x8] sm:$0xff pattern:$0x73625140]
    %v812 = vld.sshfl [vmem:[#allocation1 + $0x10] sm:$0xff pattern:$0x73625140]
    %v813 = vld.sshfl [vmem:[#allocation1 + $0x18] sm:$0xff pattern:$0x73625140]
    %v814 = vld.sshfl [vmem:[#allocation1 + $0x20] sm:$0xff pattern:$0x73625140]
    %v819 = vsel %vm87, %v814, 0
    %821 = vmatpush.msra.mxu0 %v744
    %822 = vmatpush.msra.mxu0 %v743
    %823 = vmatpush.msra.mxu0 %v742
    %824 = vmatpush.msra.mxu0 %v741
    %825 = vmatpush.msra.mxu0 %v740
    %826 = vmatpush.msra.mxu0 %v739
    %827 = vmatpush.msra.mxu0 %v738
    %828 = vmatpush.msra.mxu0 %v737
    %829 = vmatpush.msra.mxu0 %v736
    %830 = vmatpush.msra.mxu0 %v735
    %831 = vmatpush.msra.mxu0 %v734
    %832 = vmatpush.msra.mxu0 %v733
    %833 = vmatpush.msra.mxu0 %v732
    %834 = vmatpush.msra.mxu0 %v731
    %835 = vmatpush.msra.mxu0 %v730
    %836 = vmatpush.msra.mxu0 %v729
    %837 = vmatmul.f32.gmra.mxu0 %v810
    %v838 = vpop.f32.mrf.mxu0
    %v839 = vadd.f32 %v803, %v838
    %840 = vdwg.mxu0
    %841 = vmatpush.msra.mxu0 %v760
    %842 = vmatpush.msra.mxu0 %v759
    %843 = vmatpush.msra.mxu0 %v758
    %844 = vmatpush.msra.mxu0 %v757
    %845 = vmatpush.msra.mxu0 %v756
    %846 = vmatpush.msra.mxu0 %v755
    %847 = vmatpush.msra.mxu0 %v754
    %848 = vmatpush.msra.mxu0 %v753
    %849 = vmatpush.msra.mxu0 %v752
    %850 = vmatpush.msra.mxu0 %v751
    %851 = vmatpush.msra.mxu0 %v750
    %852 = vmatpush.msra.mxu0 %v749
    %853 = vmatpush.msra.mxu0 %v748
    %854 = vmatpush.msra.mxu0 %v747
    %855 = vmatpush.msra.mxu0 %v746
    %856 = vmatpush.msra.mxu0 %v745
    %857 = vmatmul.f32.gmra.mxu0 %v811
    %v858 = vpop.f32.mrf.mxu0
    %v859 = vadd.f32 %v839, %v858
    %860 = vdwg.mxu0
    %861 = vmatpush.msra.mxu0 %v776
    %862 = vmatpush.msra.mxu0 %v775
    %863 = vmatpush.msra.mxu0 %v774
    %864 = vmatpush.msra.mxu0 %v773
    %865 = vmatpush.msra.mxu0 %v772
    %866 = vmatpush.msra.mxu0 %v771
    %867 = vmatpush.msra.mxu0 %v770
    %868 = vmatpush.msra.mxu0 %v769
    %869 = vmatpush.msra.mxu0 %v768
    %870 = vmatpush.msra.mxu0 %v767
    %871 = vmatpush.msra.mxu0 %v766
    %872 = vmatpush.msra.mxu0 %v765
    %873 = vmatpush.msra.mxu0 %v764
    %874 = vmatpush.msra.mxu0 %v763
    %875 = vmatpush.msra.mxu0 %v762
    %876 = vmatpush.msra.mxu0 %v761
    %877 = vmatmul.f32.gmra.mxu0 %v812
    %v878 = vpop.f32.mrf.mxu0
    %v879 = vadd.f32 %v859, %v878
    %880 = vdwg.mxu0
    %881 = vmatpush.msra.mxu0 %v792
    %882 = vmatpush.msra.mxu0 %v791
    %883 = vmatpush.msra.mxu0 %v790
    %884 = vmatpush.msra.mxu0 %v789
    %885 = vmatpush.msra.mxu0 %v788
    %886 = vmatpush.msra.mxu0 %v787
    %887 = vmatpush.msra.mxu0 %v786
    %888 = vmatpush.msra.mxu0 %v785
    %889 = vmatpush.msra.mxu0 %v784
    %890 = vmatpush.msra.mxu0 %v783
    %891 = vmatpush.msra.mxu0 %v782
    %892 = vmatpush.msra.mxu0 %v781
    %893 = vmatpush.msra.mxu0 %v780
    %894 = vmatpush.msra.mxu0 %v779
    %895 = vmatpush.msra.mxu0 %v778
    %896 = vmatpush.msra.mxu0 %v777
    %897 = vmatmul.f32.gmra.mxu0 %v813
    %v898 = vpop.f32.mrf.mxu0
    %v899 = vadd.f32 %v879, %v898
    %900 = vdwg.mxu0
    %901 = vmatpush.msra.mxu0 0.0
    %902 = vmatpush.msra.mxu0 0.0
    %903 = vmatpush.msra.mxu0 0.0
    %904 = vmatpush.msra.mxu0 0.0
    %905 = vmatpush.msra.mxu0 0.0
    %906 = vmatpush.msra.mxu0 0.0
    %907 = vmatpush.msra.mxu0 0.0
    %908 = vmatpush.msra.mxu0 0.0
    %909 = vmatpush.msra.mxu0 %v800
    %910 = vmatpush.msra.mxu0 %v799
    %911 = vmatpush.msra.mxu0 %v798
    %912 = vmatpush.msra.mxu0 %v797
    %913 = vmatpush.msra.mxu0 %v796
    %914 = vmatpush.msra.mxu0 %v795
    %915 = vmatpush.msra.mxu0 %v794
    %916 = vmatpush.msra.mxu0 %v793
    %917 = vmatmul.f32.gmra.mxu0 %v819
    %v918 = vpop.f32.mrf.mxu0
    %v919 = vadd.f32 %v899, %v918
    %920 = vdwg.mxu0
    %v921 = vmax.f32 %v919, 0.0
    %922 = vst.msk [vmem:[#allocation6] sm:$0x3] %vm655, %v921
    // Predicated region
    $region30: #{actor_gaussian_forward.1} parent=1 // pred_check
      _
    $region31: #{actor_gaussian_forward.1} parent=1 // pred_check_branch
      %924 = sbr.rel (0) target = $region33
    $region32: #{actor_gaussian_forward.1} parent=1 // pred_region
      %926 = vsyncadd [#allocation7], 0
      %s928 = sshll.u32 [#allocation6], 4
      %s929 = int_to_ptr.vmem [resolvable:$true] %s928
      %s930 = sshll.u32 %s7, 4
      %s931 = int_to_ptr.hbm [resolvable:$true] %s930
      %933 = dma.vmem_to_hbm [thread:$0]  %s929, 32, %s931, [#allocation7]
    $region33: #{actor_gaussian_forward.1} parent=1 // pred_fallthru
      _
    // Predicated region
    $region34: #{actor_gaussian_forward.1} parent=1 // pred_check
      _
    $region35: #{actor_gaussian_forward.1} parent=1 // pred_check_branch
      %935 = sbr.rel (0) target = $region37
    $region36: #{actor_gaussian_forward.1} parent=1 // pred_region
      %937 = dma.done [#allocation7], 32
    $region37: #{actor_gaussian_forward.1} parent=1 // pred_fallthru
      _
    %938 = vsyncpa [#allocation7], 1

</llo_original>
